<compile_context>
chip_gen: v7x
topology: tpu7x:2x2x1
jax: 0.10.0
libtpu: 0.0.40
codegen_flags: <defaults>
</compile_context>

<pallas_src>
import functools

import jax
import jax.numpy as jnp
from jax import lax
from jax.experimental import pallas as pl
from jax.experimental.pallas import tpu as pltpu


def _keypoint_lstm_kernel(num_layers, hidden_size, *refs):
    """Single-invocation kernel: full LSTM stack + MLP head, all tiles in VMEM.

    refs layout:
      refs[0]                          x_ref     (T, B, I)   time-major, B padded to 8
      refs[1 + 3*l .. 3 + 3*l]         layer l:  wih_T (in,4H), whh_T (H,4H), bias (1,4H)
      refs[1 + 3*L .. 4 + 3*L]         head:     w_fc1 (H,H), b_fc1 (1,H),
                                                 w_fc2 (H,Cpad), b_fc2 (1,Cpad)
      refs[5 + 3*L]                    out_ref   (B, Cpad)   lane-dense
      refs[6 + 3*L]                    seq_ref   (T, B, H)   VMEM scratch
      refs[7 + 3*L]                    gx_ref    (T, B, 4H)  VMEM scratch
    """
    L = num_layers
    H = hidden_size

    x_ref = refs[0]
    layer_refs = refs[1:1 + 3 * L]
    w1_ref, b1_ref, w2_ref, b2_ref = refs[1 + 3 * L: 5 + 3 * L]
    out_ref = refs[5 + 3 * L]
    seq_ref = refs[6 + 3 * L]
    gx_ref = refs[7 + 3 * L]

    T, B, I = x_ref.shape

    def run_layer(layer_idx, xs):
        """xs: (T*B, in) — this layer's full input sequence, flattened."""
        wih_t = layer_refs[3 * layer_idx][...]      # (in, 4H)
        whh_t = layer_refs[3 * layer_idx + 1][...]  # (H, 4H)
        bias = layer_refs[3 * layer_idx + 2][...]   # (1, 4H) = b_ih + b_hh

        # Input projection for ALL timesteps as one GEMM (off the serial chain).
        # Bias is folded in here, so the recurrence never re-broadcasts it.
        gx = jnp.dot(xs, wih_t, preferred_element_type=jnp.float32) + bias
        gx_ref[...] = gx.reshape(T, B, 4 * H)

        def step(t, carry):
            h, c = carry
            # Only the hidden-state matmul remains on the recurrence chain.
            gates = gx_ref[t] + jnp.dot(h, whh_t,
                                        preferred_element_type=jnp.float32)
            # Full-vreg activations on the EUP, then slice gate regions.
            sig = jax.nn.sigmoid(gates)             # (B, 4H)
            th = jnp.tanh(gates)                    # (B, 4H)
            i_g = sig[:, 0:H]
            f_g = sig[:, H:2 * H]
            g_g = th[:, 2 * H:3 * H]
            o_g = sig[:, 3 * H:4 * H]
            c_new = f_g * c + i_g * g_g
            h_new = o_g * jnp.tanh(c_new)
            # This layer's output at time t (consumed by the next layer). All of
            # the previous layer's seq was already read into `xs` above, so the
            # in-place overwrite is safe.
            seq_ref[t] = h_new
            return (h_new, c_new)

        h0 = jnp.zeros((B, H), jnp.float32)
        c0 = jnp.zeros((B, H), jnp.float32)
        # T is small & static: fully unroll so the scheduler interleaves steps.
        h_last, _ = lax.fori_loop(0, T, step, (h0, c0), unroll=True)
        return h_last

    # Layer 0 reads the input sequence; deeper layers read the seq scratch.
    h_last = run_layer(0, x_ref[...].reshape(T * B, I))
    for l in range(1, L):
        h_last = run_layer(l, seq_ref[...].reshape(T * B, H))

    # h_last == lstm_out[:, -1]. Dropout(0.3): identity in inference mode.
    z = jnp.dot(h_last, w1_ref[...], preferred_element_type=jnp.float32) + b1_ref[...]
    z = jnp.where(z > 0, z, jnp.float32(0.01) * z)          # LeakyReLU(0.01)
    y = jnp.dot(z, w2_ref[...], preferred_element_type=jnp.float32) + b2_ref[...]
    out_ref[...] = y.astype(out_ref.dtype)                  # lane-dense (B, 128) store


def keypoint_lstm_forward(x, params, *, num_layers, hidden_size, num_classes):
    """x: (B, T, I) float32 (batch_first, like the PyTorch module)."""
    B, T, I = x.shape
    B_pad = ((B + 7) // 8) * 8                 # sublane granule
    C_pad = ((num_classes + 127) // 128) * 128  # lane-dense output tile

    # Pad batch to 8 rows; padded rows are independent and sliced off below.
    x_p = jnp.pad(x, ((0, B_pad - B), (0, 0), (0, 0)))
    x_tm = jnp.transpose(x_p, (1, 0, 2))        # time-major (T, B_pad, I)

    # Pad final-layer weights/bias to the lane-dense class width (zeros).
    w2_p = jnp.pad(params["w_fc2"], ((0, 0), (0, C_pad - num_classes)))
    b2_p = jnp.pad(params["b_fc2"], ((0, 0), (0, C_pad - num_classes)))

    args = [x_tm]
    for l in range(num_layers):
        args += [params[f"wih_{l}"], params[f"whh_{l}"], params[f"b_{l}"]]
    args += [params["w_fc1"], params["b_fc1"], w2_p, b2_p]

    kernel = functools.partial(_keypoint_lstm_kernel, num_layers, hidden_size)
    out_p = pl.pallas_call(
        kernel,
        out_shape=jax.ShapeDtypeStruct((B_pad, C_pad), jnp.float32),
        in_specs=[pl.BlockSpec(memory_space=pltpu.MemorySpace.VMEM)] * len(args),
        out_specs=pl.BlockSpec(memory_space=pltpu.MemorySpace.VMEM),
        scratch_shapes=[
            pltpu.VMEM((T, B_pad, hidden_size), jnp.float32),      # seq between layers
            pltpu.VMEM((T, B_pad, 4 * hidden_size), jnp.float32),  # precomputed gates
        ],
    )(*args)
    return out_p[:B, :num_classes]


def init_params(key, input_size, hidden_size, num_layers, num_classes):
    """Deterministic init mirroring PyTorch parameter shapes (weights stored transposed)."""
    H = hidden_size
    k = 1.0 / jnp.sqrt(jnp.float32(H))
    params = {}
    for l in range(num_layers):
        in_dim = input_size if l == 0 else H
        key, k1, k2, k3, k4 = jax.random.split(key, 5)
        w_ih = jax.random.uniform(k1, (4 * H, in_dim), jnp.float32, -k, k)  # PyTorch (4H, in)
        w_hh = jax.random.uniform(k2, (4 * H, H), jnp.float32, -k, k)       # PyTorch (4H, H)
        b_ih = jax.random.uniform(k3, (4 * H,), jnp.float32, -k, k)
        b_hh = jax.random.uniform(k4, (4 * H,), jnp.float32, -k, k)
        params[f"wih_{l}"] = w_ih.T                       # (in, 4H)
        params[f"whh_{l}"] = w_hh.T                       # (H, 4H)
        params[f"b_{l}"] = (b_ih + b_hh).reshape(1, 4 * H)
    key, k1, k2, k3, k4 = jax.random.split(key, 5)
    kf = 1.0 / jnp.sqrt(jnp.float32(H))
    params["w_fc1"] = jax.random.uniform(k1, (H, H), jnp.float32, -kf, kf)            # transposed
    params["b_fc1"] = jax.random.uniform(k2, (1, H), jnp.float32, -kf, kf)
    params["w_fc2"] = jax.random.uniform(k3, (H, num_classes), jnp.float32, -kf, kf)  # transposed
    params["b_fc2"] = jax.random.uniform(k4, (1, num_classes), jnp.float32, -kf, kf)
    return params


def reference_forward(x, params, *, num_layers, hidden_size):
    """Pure-JAX reference of the same math (for correctness checking)."""
    B, T, _ = x.shape
    H = hidden_size
    h_seq = x
    for l in range(num_layers):
        wih, whh, b = params[f"wih_{l}"], params[f"whh_{l}"], params[f"b_{l}"]
        h = jnp.zeros((B, H), jnp.float32)
        c = jnp.zeros((B, H), jnp.float32)
        outs = []
        for t in range(T):
            gates = h_seq[:, t, :] @ wih + h @ whh + b
            i_g = jax.nn.sigmoid(gates[:, 0:H])
            f_g = jax.nn.sigmoid(gates[:, H:2 * H])
            g_g = jnp.tanh(gates[:, 2 * H:3 * H])
            o_g = jax.nn.sigmoid(gates[:, 3 * H:4 * H])
            c = f_g * c + i_g * g_g
            h = o_g * jnp.tanh(c)
            outs.append(h)
        h_seq = jnp.stack(outs, axis=1)
    z = h_seq[:, -1] @ params["w_fc1"] + params["b_fc1"]
    z = jnp.where(z > 0, z, 0.01 * z)
    return z @ params["w_fc2"] + params["b_fc2"]


if __name__ == "__main__":
    # Small shapes implied by the forward: x is (batch, seq, input_size).
    B, T, INPUT, HIDDEN, LAYERS, CLASSES = 4, 8, 16, 32, 2, 5

    key = jax.random.PRNGKey(0)
    key, kx = jax.random.split(key)
    x = jax.random.normal(kx, (B, T, INPUT), jnp.float32)
    params = init_params(key, INPUT, HIDDEN, LAYERS, CLASSES)

    out = keypoint_lstm_forward(
        x, params, num_layers=LAYERS, hidden_size=HIDDEN, num_classes=CLASSES)
    out = jax.block_until_ready(out)

    ref = reference_forward(x, params, num_layers=LAYERS, hidden_size=HIDDEN)
    assert out.shape == (B, CLASSES)
    assert jnp.allclose(out, ref, atol=1e-4, rtol=1e-4), (out, ref)

    print("KERNEL_OK")
</pallas_src>

<mosaic_0001>
module attributes {stable_mosaic.version = 11 : i64} {
  func.func @_keypoint_lstm_kernel(%arg0: memref<8x8x16xf32, #tpu.memory_space<vmem>>, %arg1: memref<16x128xf32, #tpu.memory_space<vmem>>, %arg2: memref<32x128xf32, #tpu.memory_space<vmem>>, %arg3: memref<1x128xf32, #tpu.memory_space<vmem>>, %arg4: memref<32x128xf32, #tpu.memory_space<vmem>>, %arg5: memref<32x128xf32, #tpu.memory_space<vmem>>, %arg6: memref<1x128xf32, #tpu.memory_space<vmem>>, %arg7: memref<32x32xf32, #tpu.memory_space<vmem>>, %arg8: memref<1x32xf32, #tpu.memory_space<vmem>>, %arg9: memref<32x128xf32, #tpu.memory_space<vmem>>, %arg10: memref<1x128xf32, #tpu.memory_space<vmem>>, %arg11: memref<8x128xf32, #tpu.memory_space<vmem>>, %arg12: memref<8x8x32xf32, #tpu.memory_space<vmem>>, %arg13: memref<8x8x128xf32, #tpu.memory_space<vmem>>) attributes {dimension_semantics = [], scalar_prefetch = 0 : i64, scratch_operands = 2 : i64, tpu.core_type = #tpu.core_type<tc>} {
    %c0 = arith.constant 0 : index
    %c0_0 = arith.constant 0 : index
    %c0_1 = arith.constant 0 : index
    %0 = vector.load %arg0[%c0, %c0_0, %c0_1] : memref<8x8x16xf32, #tpu.memory_space<vmem>>, vector<8x8x16xf32>
    %1 = vector.shape_cast %0 : vector<8x8x16xf32> to vector<64x16xf32>
    %c0_2 = arith.constant 0 : index
    %c0_3 = arith.constant 0 : index
    %2 = vector.load %arg1[%c0_2, %c0_3] : memref<16x128xf32, #tpu.memory_space<vmem>>, vector<16x128xf32>
    %c0_4 = arith.constant 0 : index
    %c0_5 = arith.constant 0 : index
    %3 = vector.load %arg2[%c0_4, %c0_5] : memref<32x128xf32, #tpu.memory_space<vmem>>, vector<32x128xf32>
    %c0_6 = arith.constant 0 : index
    %c0_7 = arith.constant 0 : index
    %4 = vector.load %arg3[%c0_6, %c0_7] : memref<1x128xf32, #tpu.memory_space<vmem>>, vector<1x128xf32>
    %cst = arith.constant dense<0.000000e+00> : vector<64x128xf32>
    %5 = tpu.matmul %1, %2, %cst {dimension_numbers = #tpu.dot_dimension_numbers<[1], [0], [0], [1], [0, 0, 1, 1], [], []>} : vector<64x16xf32>, vector<16x128xf32>, vector<64x128xf32> -> vector<64x128xf32>
    %6 = vector.broadcast %4 : vector<1x128xf32> to vector<64x128xf32>
    %7 = arith.addf %5, %6 : vector<64x128xf32>
    %8 = vector.shape_cast %7 : vector<64x128xf32> to vector<8x8x128xf32>
    %c0_8 = arith.constant 0 : index
    %c0_9 = arith.constant 0 : index
    %c0_10 = arith.constant 0 : index
    %9 = vector.load %arg13[%c0_8, %c0_9, %c0_10] : memref<8x8x128xf32, #tpu.memory_space<vmem>>, vector<8x8x128xf32>
    tpu.vector_store %arg13[%c0_8, %c0_9, %c0_10], %8 {strides = array<i32>} : memref<8x8x128xf32, #tpu.memory_space<vmem>>, vector<8x8x128xf32>,
    %cst_11 = arith.constant 0.000000e+00 : f32
    %10 = vector.broadcast %cst_11 : f32 to vector<8x32xf32>
    %cst_12 = arith.constant 0.000000e+00 : f32
    %11 = vector.broadcast %cst_12 : f32 to vector<8x32xf32>
    %c0_i32 = arith.constant 0 : i32
    %12 = arith.index_cast %c0_i32 : i32 to index
    %c0_13 = arith.constant 0 : index
    %c0_14 = arith.constant 0 : index
    %13 = vector.load %arg13[%12, %c0_13, %c0_14] : memref<8x8x128xf32, #tpu.memory_space<vmem>>, vector<1x8x128xf32>
    %14 = vector.shape_cast %13 : vector<1x8x128xf32> to vector<8x128xf32>
    %cst_15 = arith.constant dense<0.000000e+00> : vector<8x128xf32>
    %15 = tpu.matmul %10, %3, %cst_15 {dimension_numbers = #tpu.dot_dimension_numbers<[1], [0], [0], [1], [0, 0, 1, 1], [], []>} : vector<8x32xf32>, vector<32x128xf32>, vector<8x128xf32> -> vector<8x128xf32>
    %16 = arith.addf %14, %15 : vector<8x128xf32>
    %17 = arith.negf %16 : vector<8x128xf32>
    %18 = math.exp %17 : vector<8x128xf32>
    %cst_16 = arith.constant 1.000000e+00 : f32
    %19 = vector.broadcast %cst_16 : f32 to vector<8x128xf32>
    %20 = arith.addf %19, %18 : vector<8x128xf32>
    %21 = arith.divf %19, %20 : vector<8x128xf32>
    %22 = math.tanh %16 : vector<8x128xf32>
    %23 = vector.extract_strided_slice %21 {offsets = [0, 0], sizes = [8, 32], strides = [1, 1]} : vector<8x128xf32> to vector<8x32xf32>
    %24 = vector.extract_strided_slice %21 {offsets = [0, 32], sizes = [8, 32], strides = [1, 1]} : vector<8x128xf32> to vector<8x32xf32>
    %25 = vector.extract_strided_slice %22 {offsets = [0, 64], sizes = [8, 32], strides = [1, 1]} : vector<8x128xf32> to vector<8x32xf32>
    %26 = vector.extract_strided_slice %21 {offsets = [0, 96], sizes = [8, 32], strides = [1, 1]} : vector<8x128xf32> to vector<8x32xf32>
    %27 = arith.mulf %24, %11 : vector<8x32xf32>
    %28 = arith.mulf %23, %25 : vector<8x32xf32>
    %29 = arith.addf %27, %28 : vector<8x32xf32>
    %30 = math.tanh %29 : vector<8x32xf32>
    %31 = arith.mulf %26, %30 : vector<8x32xf32>
    %32 = arith.index_cast %c0_i32 : i32 to index
    %c0_17 = arith.constant 0 : index
    %c0_18 = arith.constant 0 : index
    %33 = vector.load %arg12[%32, %c0_17, %c0_18] : memref<8x8x32xf32, #tpu.memory_space<vmem>>, vector<1x8x32xf32>
    %34 = vector.shape_cast %33 : vector<1x8x32xf32> to vector<8x32xf32>
    %35 = vector.shape_cast %31 : vector<8x32xf32> to vector<1x8x32xf32>
    tpu.vector_store %arg12[%32, %c0_17, %c0_18], %35 {strides = array<i32>} : memref<8x8x32xf32, #tpu.memory_space<vmem>>, vector<1x8x32xf32>,
    %c1_i32 = arith.constant 1 : i32
    %36 = arith.index_cast %c1_i32 : i32 to index
    %c0_19 = arith.constant 0 : index
    %c0_20 = arith.constant 0 : index
    %37 = vector.load %arg13[%36, %c0_19, %c0_20] : memref<8x8x128xf32, #tpu.memory_space<vmem>>, vector<1x8x128xf32>
    %38 = vector.shape_cast %37 : vector<1x8x128xf32> to vector<8x128xf32>
    %cst_21 = arith.constant dense<0.000000e+00> : vector<8x128xf32>
    %39 = tpu.matmul %31, %3, %cst_21 {dimension_numbers = #tpu.dot_dimension_numbers<[1], [0], [0], [1], [0, 0, 1, 1], [], []>} : vector<8x32xf32>, vector<32x128xf32>, vector<8x128xf32> -> vector<8x128xf32>
    %40 = arith.addf %38, %39 : vector<8x128xf32>
    %41 = arith.negf %40 : vector<8x128xf32>
    %42 = math.exp %41 : vector<8x128xf32>
    %cst_22 = arith.constant 1.000000e+00 : f32
    %43 = vector.broadcast %cst_22 : f32 to vector<8x128xf32>
    %44 = arith.addf %43, %42 : vector<8x128xf32>
    %45 = arith.divf %43, %44 : vector<8x128xf32>
    %46 = math.tanh %40 : vector<8x128xf32>
    %47 = vector.extract_strided_slice %45 {offsets = [0, 0], sizes = [8, 32], strides = [1, 1]} : vector<8x128xf32> to vector<8x32xf32>
    %48 = vector.extract_strided_slice %45 {offsets = [0, 32], sizes = [8, 32], strides = [1, 1]} : vector<8x128xf32> to vector<8x32xf32>
    %49 = vector.extract_strided_slice %46 {offsets = [0, 64], sizes = [8, 32], strides = [1, 1]} : vector<8x128xf32> to vector<8x32xf32>
    %50 = vector.extract_strided_slice %45 {offsets = [0, 96], sizes = [8, 32], strides = [1, 1]} : vector<8x128xf32> to vector<8x32xf32>
    %51 = arith.mulf %48, %29 : vector<8x32xf32>
    %52 = arith.mulf %47, %49 : vector<8x32xf32>
    %53 = arith.addf %51, %52 : vector<8x32xf32>
    %54 = math.tanh %53 : vector<8x32xf32>
    %55 = arith.mulf %50, %54 : vector<8x32xf32>
    %56 = arith.index_cast %c1_i32 : i32 to index
    %c0_23 = arith.constant 0 : index
    %c0_24 = arith.constant 0 : index
    %57 = vector.load %arg12[%56, %c0_23, %c0_24] : memref<8x8x32xf32, #tpu.memory_space<vmem>>, vector<1x8x32xf32>
    %58 = vector.shape_cast %57 : vector<1x8x32xf32> to vector<8x32xf32>
    %59 = vector.shape_cast %55 : vector<8x32xf32> to vector<1x8x32xf32>
    tpu.vector_store %arg12[%56, %c0_23, %c0_24], %59 {strides = array<i32>} : memref<8x8x32xf32, #tpu.memory_space<vmem>>, vector<1x8x32xf32>,
    %c2_i32 = arith.constant 2 : i32
    %60 = arith.index_cast %c2_i32 : i32 to index
    %c0_25 = arith.constant 0 : index
    %c0_26 = arith.constant 0 : index
    %61 = vector.load %arg13[%60, %c0_25, %c0_26] : memref<8x8x128xf32, #tpu.memory_space<vmem>>, vector<1x8x128xf32>
    %62 = vector.shape_cast %61 : vector<1x8x128xf32> to vector<8x128xf32>
    %cst_27 = arith.constant dense<0.000000e+00> : vector<8x128xf32>
    %63 = tpu.matmul %55, %3, %cst_27 {dimension_numbers = #tpu.dot_dimension_numbers<[1], [0], [0], [1], [0, 0, 1, 1], [], []>} : vector<8x32xf32>, vector<32x128xf32>, vector<8x128xf32> -> vector<8x128xf32>
    %64 = arith.addf %62, %63 : vector<8x128xf32>
    %65 = arith.negf %64 : vector<8x128xf32>
    %66 = math.exp %65 : vector<8x128xf32>
    %cst_28 = arith.constant 1.000000e+00 : f32
    %67 = vector.broadcast %cst_28 : f32 to vector<8x128xf32>
    %68 = arith.addf %67, %66 : vector<8x128xf32>
    %69 = arith.divf %67, %68 : vector<8x128xf32>
    %70 = math.tanh %64 : vector<8x128xf32>
    %71 = vector.extract_strided_slice %69 {offsets = [0, 0], sizes = [8, 32], strides = [1, 1]} : vector<8x128xf32> to vector<8x32xf32>
    %72 = vector.extract_strided_slice %69 {offsets = [0, 32], sizes = [8, 32], strides = [1, 1]} : vector<8x128xf32> to vector<8x32xf32>
    %73 = vector.extract_strided_slice %70 {offsets = [0, 64], sizes = [8, 32], strides = [1, 1]} : vector<8x128xf32> to vector<8x32xf32>
    %74 = vector.extract_strided_slice %69 {offsets = [0, 96], sizes = [8, 32], strides = [1, 1]} : vector<8x128xf32> to vector<8x32xf32>
    %75 = arith.mulf %72, %53 : vector<8x32xf32>
    %76 = arith.mulf %71, %73 : vector<8x32xf32>
    %77 = arith.addf %75, %76 : vector<8x32xf32>
    %78 = math.tanh %77 : vector<8x32xf32>
    %79 = arith.mulf %74, %78 : vector<8x32xf32>
    %80 = arith.index_cast %c2_i32 : i32 to index
    %c0_29 = arith.constant 0 : index
    %c0_30 = arith.constant 0 : index
    %81 = vector.load %arg12[%80, %c0_29, %c0_30] : memref<8x8x32xf32, #tpu.memory_space<vmem>>, vector<1x8x32xf32>
    %82 = vector.shape_cast %81 : vector<1x8x32xf32> to vector<8x32xf32>
    %83 = vector.shape_cast %79 : vector<8x32xf32> to vector<1x8x32xf32>
    tpu.vector_store %arg12[%80, %c0_29, %c0_30], %83 {strides = array<i32>} : memref<8x8x32xf32, #tpu.memory_space<vmem>>, vector<1x8x32xf32>,
    %c3_i32 = arith.constant 3 : i32
    %84 = arith.index_cast %c3_i32 : i32 to index
    %c0_31 = arith.constant 0 : index
    %c0_32 = arith.constant 0 : index
    %85 = vector.load %arg13[%84, %c0_31, %c0_32] : memref<8x8x128xf32, #tpu.memory_space<vmem>>, vector<1x8x128xf32>
    %86 = vector.shape_cast %85 : vector<1x8x128xf32> to vector<8x128xf32>
    %cst_33 = arith.constant dense<0.000000e+00> : vector<8x128xf32>
    %87 = tpu.matmul %79, %3, %cst_33 {dimension_numbers = #tpu.dot_dimension_numbers<[1], [0], [0], [1], [0, 0, 1, 1], [], []>} : vector<8x32xf32>, vector<32x128xf32>, vector<8x128xf32> -> vector<8x128xf32>
    %88 = arith.addf %86, %87 : vector<8x128xf32>
    %89 = arith.negf %88 : vector<8x128xf32>
    %90 = math.exp %89 : vector<8x128xf32>
    %cst_34 = arith.constant 1.000000e+00 : f32
    %91 = vector.broadcast %cst_34 : f32 to vector<8x128xf32>
    %92 = arith.addf %91, %90 : vector<8x128xf32>
    %93 = arith.divf %91, %92 : vector<8x128xf32>
    %94 = math.tanh %88 : vector<8x128xf32>
    %95 = vector.extract_strided_slice %93 {offsets = [0, 0], sizes = [8, 32], strides = [1, 1]} : vector<8x128xf32> to vector<8x32xf32>
    %96 = vector.extract_strided_slice %93 {offsets = [0, 32], sizes = [8, 32], strides = [1, 1]} : vector<8x128xf32> to vector<8x32xf32>
    %97 = vector.extract_strided_slice %94 {offsets = [0, 64], sizes = [8, 32], strides = [1, 1]} : vector<8x128xf32> to vector<8x32xf32>
    %98 = vector.extract_strided_slice %93 {offsets = [0, 96], sizes = [8, 32], strides = [1, 1]} : vector<8x128xf32> to vector<8x32xf32>
    %99 = arith.mulf %96, %77 : vector<8x32xf32>
    %100 = arith.mulf %95, %97 : vector<8x32xf32>
    %101 = arith.addf %99, %100 : vector<8x32xf32>
    %102 = math.tanh %101 : vector<8x32xf32>
    %103 = arith.mulf %98, %102 : vector<8x32xf32>
    %104 = arith.index_cast %c3_i32 : i32 to index
    %c0_35 = arith.constant 0 : index
    %c0_36 = arith.constant 0 : index
    %105 = vector.load %arg12[%104, %c0_35, %c0_36] : memref<8x8x32xf32, #tpu.memory_space<vmem>>, vector<1x8x32xf32>
    %106 = vector.shape_cast %105 : vector<1x8x32xf32> to vector<8x32xf32>
    %107 = vector.shape_cast %103 : vector<8x32xf32> to vector<1x8x32xf32>
    tpu.vector_store %arg12[%104, %c0_35, %c0_36], %107 {strides = array<i32>} : memref<8x8x32xf32, #tpu.memory_space<vmem>>, vector<1x8x32xf32>,
    %c4_i32 = arith.constant 4 : i32
    %108 = arith.index_cast %c4_i32 : i32 to index
    %c0_37 = arith.constant 0 : index
    %c0_38 = arith.constant 0 : index
    %109 = vector.load %arg13[%108, %c0_37, %c0_38] : memref<8x8x128xf32, #tpu.memory_space<vmem>>, vector<1x8x128xf32>
    %110 = vector.shape_cast %109 : vector<1x8x128xf32> to vector<8x128xf32>
    %cst_39 = arith.constant dense<0.000000e+00> : vector<8x128xf32>
    %111 = tpu.matmul %103, %3, %cst_39 {dimension_numbers = #tpu.dot_dimension_numbers<[1], [0], [0], [1], [0, 0, 1, 1], [], []>} : vector<8x32xf32>, vector<32x128xf32>, vector<8x128xf32> -> vector<8x128xf32>
    %112 = arith.addf %110, %111 : vector<8x128xf32>
    %113 = arith.negf %112 : vector<8x128xf32>
    %114 = math.exp %113 : vector<8x128xf32>
    %cst_40 = arith.constant 1.000000e+00 : f32
    %115 = vector.broadcast %cst_40 : f32 to vector<8x128xf32>
    %116 = arith.addf %115, %114 : vector<8x128xf32>
    %117 = arith.divf %115, %116 : vector<8x128xf32>
    %118 = math.tanh %112 : vector<8x128xf32>
    %119 = vector.extract_strided_slice %117 {offsets = [0, 0], sizes = [8, 32], strides = [1, 1]} : vector<8x128xf32> to vector<8x32xf32>
    %120 = vector.extract_strided_slice %117 {offsets = [0, 32], sizes = [8, 32], strides = [1, 1]} : vector<8x128xf32> to vector<8x32xf32>
    %121 = vector.extract_strided_slice %118 {offsets = [0, 64], sizes = [8, 32], strides = [1, 1]} : vector<8x128xf32> to vector<8x32xf32>
    %122 = vector.extract_strided_slice %117 {offsets = [0, 96], sizes = [8, 32], strides = [1, 1]} : vector<8x128xf32> to vector<8x32xf32>
    %123 = arith.mulf %120, %101 : vector<8x32xf32>
    %124 = arith.mulf %119, %121 : vector<8x32xf32>
    %125 = arith.addf %123, %124 : vector<8x32xf32>
    %126 = math.tanh %125 : vector<8x32xf32>
    %127 = arith.mulf %122, %126 : vector<8x32xf32>
    %128 = arith.index_cast %c4_i32 : i32 to index
    %c0_41 = arith.constant 0 : index
    %c0_42 = arith.constant 0 : index
    %129 = vector.load %arg12[%128, %c0_41, %c0_42] : memref<8x8x32xf32, #tpu.memory_space<vmem>>, vector<1x8x32xf32>
    %130 = vector.shape_cast %129 : vector<1x8x32xf32> to vector<8x32xf32>
    %131 = vector.shape_cast %127 : vector<8x32xf32> to vector<1x8x32xf32>
    tpu.vector_store %arg12[%128, %c0_41, %c0_42], %131 {strides = array<i32>} : memref<8x8x32xf32, #tpu.memory_space<vmem>>, vector<1x8x32xf32>,
    %c5_i32 = arith.constant 5 : i32
    %132 = arith.index_cast %c5_i32 : i32 to index
    %c0_43 = arith.constant 0 : index
    %c0_44 = arith.constant 0 : index
    %133 = vector.load %arg13[%132, %c0_43, %c0_44] : memref<8x8x128xf32, #tpu.memory_space<vmem>>, vector<1x8x128xf32>
    %134 = vector.shape_cast %133 : vector<1x8x128xf32> to vector<8x128xf32>
    %cst_45 = arith.constant dense<0.000000e+00> : vector<8x128xf32>
    %135 = tpu.matmul %127, %3, %cst_45 {dimension_numbers = #tpu.dot_dimension_numbers<[1], [0], [0], [1], [0, 0, 1, 1], [], []>} : vector<8x32xf32>, vector<32x128xf32>, vector<8x128xf32> -> vector<8x128xf32>
    %136 = arith.addf %134, %135 : vector<8x128xf32>
    %137 = arith.negf %136 : vector<8x128xf32>
    %138 = math.exp %137 : vector<8x128xf32>
    %cst_46 = arith.constant 1.000000e+00 : f32
    %139 = vector.broadcast %cst_46 : f32 to vector<8x128xf32>
    %140 = arith.addf %139, %138 : vector<8x128xf32>
    %141 = arith.divf %139, %140 : vector<8x128xf32>
    %142 = math.tanh %136 : vector<8x128xf32>
    %143 = vector.extract_strided_slice %141 {offsets = [0, 0], sizes = [8, 32], strides = [1, 1]} : vector<8x128xf32> to vector<8x32xf32>
    %144 = vector.extract_strided_slice %141 {offsets = [0, 32], sizes = [8, 32], strides = [1, 1]} : vector<8x128xf32> to vector<8x32xf32>
    %145 = vector.extract_strided_slice %142 {offsets = [0, 64], sizes = [8, 32], strides = [1, 1]} : vector<8x128xf32> to vector<8x32xf32>
    %146 = vector.extract_strided_slice %141 {offsets = [0, 96], sizes = [8, 32], strides = [1, 1]} : vector<8x128xf32> to vector<8x32xf32>
    %147 = arith.mulf %144, %125 : vector<8x32xf32>
    %148 = arith.mulf %143, %145 : vector<8x32xf32>
    %149 = arith.addf %147, %148 : vector<8x32xf32>
    %150 = math.tanh %149 : vector<8x32xf32>
    %151 = arith.mulf %146, %150 : vector<8x32xf32>
    %152 = arith.index_cast %c5_i32 : i32 to index
    %c0_47 = arith.constant 0 : index
    %c0_48 = arith.constant 0 : index
    %153 = vector.load %arg12[%152, %c0_47, %c0_48] : memref<8x8x32xf32, #tpu.memory_space<vmem>>, vector<1x8x32xf32>
    %154 = vector.shape_cast %153 : vector<1x8x32xf32> to vector<8x32xf32>
    %155 = vector.shape_cast %151 : vector<8x32xf32> to vector<1x8x32xf32>
    tpu.vector_store %arg12[%152, %c0_47, %c0_48], %155 {strides = array<i32>} : memref<8x8x32xf32, #tpu.memory_space<vmem>>, vector<1x8x32xf32>,
    %c6_i32 = arith.constant 6 : i32
    %156 = arith.index_cast %c6_i32 : i32 to index
    %c0_49 = arith.constant 0 : index
    %c0_50 = arith.constant 0 : index
    %157 = vector.load %arg13[%156, %c0_49, %c0_50] : memref<8x8x128xf32, #tpu.memory_space<vmem>>, vector<1x8x128xf32>
    %158 = vector.shape_cast %157 : vector<1x8x128xf32> to vector<8x128xf32>
    %cst_51 = arith.constant dense<0.000000e+00> : vector<8x128xf32>
    %159 = tpu.matmul %151, %3, %cst_51 {dimension_numbers = #tpu.dot_dimension_numbers<[1], [0], [0], [1], [0, 0, 1, 1], [], []>} : vector<8x32xf32>, vector<32x128xf32>, vector<8x128xf32> -> vector<8x128xf32>
    %160 = arith.addf %158, %159 : vector<8x128xf32>
    %161 = arith.negf %160 : vector<8x128xf32>
    %162 = math.exp %161 : vector<8x128xf32>
    %cst_52 = arith.constant 1.000000e+00 : f32
    %163 = vector.broadcast %cst_52 : f32 to vector<8x128xf32>
    %164 = arith.addf %163, %162 : vector<8x128xf32>
    %165 = arith.divf %163, %164 : vector<8x128xf32>
    %166 = math.tanh %160 : vector<8x128xf32>
    %167 = vector.extract_strided_slice %165 {offsets = [0, 0], sizes = [8, 32], strides = [1, 1]} : vector<8x128xf32> to vector<8x32xf32>
    %168 = vector.extract_strided_slice %165 {offsets = [0, 32], sizes = [8, 32], strides = [1, 1]} : vector<8x128xf32> to vector<8x32xf32>
    %169 = vector.extract_strided_slice %166 {offsets = [0, 64], sizes = [8, 32], strides = [1, 1]} : vector<8x128xf32> to vector<8x32xf32>
    %170 = vector.extract_strided_slice %165 {offsets = [0, 96], sizes = [8, 32], strides = [1, 1]} : vector<8x128xf32> to vector<8x32xf32>
    %171 = arith.mulf %168, %149 : vector<8x32xf32>
    %172 = arith.mulf %167, %169 : vector<8x32xf32>
    %173 = arith.addf %171, %172 : vector<8x32xf32>
    %174 = math.tanh %173 : vector<8x32xf32>
    %175 = arith.mulf %170, %174 : vector<8x32xf32>
    %176 = arith.index_cast %c6_i32 : i32 to index
    %c0_53 = arith.constant 0 : index
    %c0_54 = arith.constant 0 : index
    %177 = vector.load %arg12[%176, %c0_53, %c0_54] : memref<8x8x32xf32, #tpu.memory_space<vmem>>, vector<1x8x32xf32>
    %178 = vector.shape_cast %177 : vector<1x8x32xf32> to vector<8x32xf32>
    %179 = vector.shape_cast %175 : vector<8x32xf32> to vector<1x8x32xf32>
    tpu.vector_store %arg12[%176, %c0_53, %c0_54], %179 {strides = array<i32>} : memref<8x8x32xf32, #tpu.memory_space<vmem>>, vector<1x8x32xf32>,
    %c7_i32 = arith.constant 7 : i32
    %180 = arith.index_cast %c7_i32 : i32 to index
    %c0_55 = arith.constant 0 : index
    %c0_56 = arith.constant 0 : index
    %181 = vector.load %arg13[%180, %c0_55, %c0_56] : memref<8x8x128xf32, #tpu.memory_space<vmem>>, vector<1x8x128xf32>
    %182 = vector.shape_cast %181 : vector<1x8x128xf32> to vector<8x128xf32>
    %cst_57 = arith.constant dense<0.000000e+00> : vector<8x128xf32>
    %183 = tpu.matmul %175, %3, %cst_57 {dimension_numbers = #tpu.dot_dimension_numbers<[1], [0], [0], [1], [0, 0, 1, 1], [], []>} : vector<8x32xf32>, vector<32x128xf32>, vector<8x128xf32> -> vector<8x128xf32>
    %184 = arith.addf %182, %183 : vector<8x128xf32>
    %185 = arith.negf %184 : vector<8x128xf32>
    %186 = math.exp %185 : vector<8x128xf32>
    %cst_58 = arith.constant 1.000000e+00 : f32
    %187 = vector.broadcast %cst_58 : f32 to vector<8x128xf32>
    %188 = arith.addf %187, %186 : vector<8x128xf32>
    %189 = arith.divf %187, %188 : vector<8x128xf32>
    %190 = math.tanh %184 : vector<8x128xf32>
    %191 = vector.extract_strided_slice %189 {offsets = [0, 0], sizes = [8, 32], strides = [1, 1]} : vector<8x128xf32> to vector<8x32xf32>
    %192 = vector.extract_strided_slice %189 {offsets = [0, 32], sizes = [8, 32], strides = [1, 1]} : vector<8x128xf32> to vector<8x32xf32>
    %193 = vector.extract_strided_slice %190 {offsets = [0, 64], sizes = [8, 32], strides = [1, 1]} : vector<8x128xf32> to vector<8x32xf32>
    %194 = vector.extract_strided_slice %189 {offsets = [0, 96], sizes = [8, 32], strides = [1, 1]} : vector<8x128xf32> to vector<8x32xf32>
    %195 = arith.mulf %192, %173 : vector<8x32xf32>
    %196 = arith.mulf %191, %193 : vector<8x32xf32>
    %197 = arith.addf %195, %196 : vector<8x32xf32>
    %198 = math.tanh %197 : vector<8x32xf32>
    %199 = arith.mulf %194, %198 : vector<8x32xf32>
    %200 = arith.index_cast %c7_i32 : i32 to index
    %c0_59 = arith.constant 0 : index
    %c0_60 = arith.constant 0 : index
    %201 = vector.load %arg12[%200, %c0_59, %c0_60] : memref<8x8x32xf32, #tpu.memory_space<vmem>>, vector<1x8x32xf32>
    %202 = vector.shape_cast %201 : vector<1x8x32xf32> to vector<8x32xf32>
    %203 = vector.shape_cast %199 : vector<8x32xf32> to vector<1x8x32xf32>
    tpu.vector_store %arg12[%200, %c0_59, %c0_60], %203 {strides = array<i32>} : memref<8x8x32xf32, #tpu.memory_space<vmem>>, vector<1x8x32xf32>,
    %c8_i32 = arith.constant 8 : i32
    %c0_61 = arith.constant 0 : index
    %c0_62 = arith.constant 0 : index
    %c0_63 = arith.constant 0 : index
    %204 = vector.load %arg12[%c0_61, %c0_62, %c0_63] : memref<8x8x32xf32, #tpu.memory_space<vmem>>, vector<8x8x32xf32>
    %205 = vector.shape_cast %204 : vector<8x8x32xf32> to vector<64x32xf32>
    %c0_64 = arith.constant 0 : index
    %c0_65 = arith.constant 0 : index
    %206 = vector.load %arg4[%c0_64, %c0_65] : memref<32x128xf32, #tpu.memory_space<vmem>>, vector<32x128xf32>
    %c0_66 = arith.constant 0 : index
    %c0_67 = arith.constant 0 : index
    %207 = vector.load %arg5[%c0_66, %c0_67] : memref<32x128xf32, #tpu.memory_space<vmem>>, vector<32x128xf32>
    %c0_68 = arith.constant 0 : index
    %c0_69 = arith.constant 0 : index
    %208 = vector.load %arg6[%c0_68, %c0_69] : memref<1x128xf32, #tpu.memory_space<vmem>>, vector<1x128xf32>
    %cst_70 = arith.constant dense<0.000000e+00> : vector<64x128xf32>
    %209 = tpu.matmul %205, %206, %cst_70 {dimension_numbers = #tpu.dot_dimension_numbers<[1], [0], [0], [1], [0, 0, 1, 1], [], []>} : vector<64x32xf32>, vector<32x128xf32>, vector<64x128xf32> -> vector<64x128xf32>
    %210 = vector.broadcast %208 : vector<1x128xf32> to vector<64x128xf32>
    %211 = arith.addf %209, %210 : vector<64x128xf32>
    %212 = vector.shape_cast %211 : vector<64x128xf32> to vector<8x8x128xf32>
    %c0_71 = arith.constant 0 : index
    %c0_72 = arith.constant 0 : index
    %c0_73 = arith.constant 0 : index
    %213 = vector.load %arg13[%c0_71, %c0_72, %c0_73] : memref<8x8x128xf32, #tpu.memory_space<vmem>>, vector<8x8x128xf32>
    tpu.vector_store %arg13[%c0_71, %c0_72, %c0_73], %212 {strides = array<i32>} : memref<8x8x128xf32, #tpu.memory_space<vmem>>, vector<8x8x128xf32>,
    %cst_74 = arith.constant 0.000000e+00 : f32
    %214 = vector.broadcast %cst_74 : f32 to vector<8x32xf32>
    %cst_75 = arith.constant 0.000000e+00 : f32
    %215 = vector.broadcast %cst_75 : f32 to vector<8x32xf32>
    %c0_i32_76 = arith.constant 0 : i32
    %216 = arith.index_cast %c0_i32_76 : i32 to index
    %c0_77 = arith.constant 0 : index
    %c0_78 = arith.constant 0 : index
    %217 = vector.load %arg13[%216, %c0_77, %c0_78] : memref<8x8x128xf32, #tpu.memory_space<vmem>>, vector<1x8x128xf32>
    %218 = vector.shape_cast %217 : vector<1x8x128xf32> to vector<8x128xf32>
    %cst_79 = arith.constant dense<0.000000e+00> : vector<8x128xf32>
    %219 = tpu.matmul %214, %207, %cst_79 {dimension_numbers = #tpu.dot_dimension_numbers<[1], [0], [0], [1], [0, 0, 1, 1], [], []>} : vector<8x32xf32>, vector<32x128xf32>, vector<8x128xf32> -> vector<8x128xf32>
    %220 = arith.addf %218, %219 : vector<8x128xf32>
    %221 = arith.negf %220 : vector<8x128xf32>
    %222 = math.exp %221 : vector<8x128xf32>
    %cst_80 = arith.constant 1.000000e+00 : f32
    %223 = vector.broadcast %cst_80 : f32 to vector<8x128xf32>
    %224 = arith.addf %223, %222 : vector<8x128xf32>
    %225 = arith.divf %223, %224 : vector<8x128xf32>
    %226 = math.tanh %220 : vector<8x128xf32>
    %227 = vector.extract_strided_slice %225 {offsets = [0, 0], sizes = [8, 32], strides = [1, 1]} : vector<8x128xf32> to vector<8x32xf32>
    %228 = vector.extract_strided_slice %225 {offsets = [0, 32], sizes = [8, 32], strides = [1, 1]} : vector<8x128xf32> to vector<8x32xf32>
    %229 = vector.extract_strided_slice %226 {offsets = [0, 64], sizes = [8, 32], strides = [1, 1]} : vector<8x128xf32> to vector<8x32xf32>
    %230 = vector.extract_strided_slice %225 {offsets = [0, 96], sizes = [8, 32], strides = [1, 1]} : vector<8x128xf32> to vector<8x32xf32>
    %231 = arith.mulf %228, %215 : vector<8x32xf32>
    %232 = arith.mulf %227, %229 : vector<8x32xf32>
    %233 = arith.addf %231, %232 : vector<8x32xf32>
    %234 = math.tanh %233 : vector<8x32xf32>
    %235 = arith.mulf %230, %234 : vector<8x32xf32>
    %236 = arith.index_cast %c0_i32_76 : i32 to index
    %c0_81 = arith.constant 0 : index
    %c0_82 = arith.constant 0 : index
    %237 = vector.load %arg12[%236, %c0_81, %c0_82] : memref<8x8x32xf32, #tpu.memory_space<vmem>>, vector<1x8x32xf32>
    %238 = vector.shape_cast %237 : vector<1x8x32xf32> to vector<8x32xf32>
    %239 = vector.shape_cast %235 : vector<8x32xf32> to vector<1x8x32xf32>
    tpu.vector_store %arg12[%236, %c0_81, %c0_82], %239 {strides = array<i32>} : memref<8x8x32xf32, #tpu.memory_space<vmem>>, vector<1x8x32xf32>,
    %c1_i32_83 = arith.constant 1 : i32
    %240 = arith.index_cast %c1_i32_83 : i32 to index
    %c0_84 = arith.constant 0 : index
    %c0_85 = arith.constant 0 : index
    %241 = vector.load %arg13[%240, %c0_84, %c0_85] : memref<8x8x128xf32, #tpu.memory_space<vmem>>, vector<1x8x128xf32>
    %242 = vector.shape_cast %241 : vector<1x8x128xf32> to vector<8x128xf32>
    %cst_86 = arith.constant dense<0.000000e+00> : vector<8x128xf32>
    %243 = tpu.matmul %235, %207, %cst_86 {dimension_numbers = #tpu.dot_dimension_numbers<[1], [0], [0], [1], [0, 0, 1, 1], [], []>} : vector<8x32xf32>, vector<32x128xf32>, vector<8x128xf32> -> vector<8x128xf32>
    %244 = arith.addf %242, %243 : vector<8x128xf32>
    %245 = arith.negf %244 : vector<8x128xf32>
    %246 = math.exp %245 : vector<8x128xf32>
    %cst_87 = arith.constant 1.000000e+00 : f32
    %247 = vector.broadcast %cst_87 : f32 to vector<8x128xf32>
    %248 = arith.addf %247, %246 : vector<8x128xf32>
    %249 = arith.divf %247, %248 : vector<8x128xf32>
    %250 = math.tanh %244 : vector<8x128xf32>
    %251 = vector.extract_strided_slice %249 {offsets = [0, 0], sizes = [8, 32], strides = [1, 1]} : vector<8x128xf32> to vector<8x32xf32>
    %252 = vector.extract_strided_slice %249 {offsets = [0, 32], sizes = [8, 32], strides = [1, 1]} : vector<8x128xf32> to vector<8x32xf32>
    %253 = vector.extract_strided_slice %250 {offsets = [0, 64], sizes = [8, 32], strides = [1, 1]} : vector<8x128xf32> to vector<8x32xf32>
    %254 = vector.extract_strided_slice %249 {offsets = [0, 96], sizes = [8, 32], strides = [1, 1]} : vector<8x128xf32> to vector<8x32xf32>
    %255 = arith.mulf %252, %233 : vector<8x32xf32>
    %256 = arith.mulf %251, %253 : vector<8x32xf32>
    %257 = arith.addf %255, %256 : vector<8x32xf32>
    %258 = math.tanh %257 : vector<8x32xf32>
    %259 = arith.mulf %254, %258 : vector<8x32xf32>
    %260 = arith.index_cast %c1_i32_83 : i32 to index
    %c0_88 = arith.constant 0 : index
    %c0_89 = arith.constant 0 : index
    %261 = vector.load %arg12[%260, %c0_88, %c0_89] : memref<8x8x32xf32, #tpu.memory_space<vmem>>, vector<1x8x32xf32>
    %262 = vector.shape_cast %261 : vector<1x8x32xf32> to vector<8x32xf32>
    %263 = vector.shape_cast %259 : vector<8x32xf32> to vector<1x8x32xf32>
    tpu.vector_store %arg12[%260, %c0_88, %c0_89], %263 {strides = array<i32>} : memref<8x8x32xf32, #tpu.memory_space<vmem>>, vector<1x8x32xf32>,
    %c2_i32_90 = arith.constant 2 : i32
    %264 = arith.index_cast %c2_i32_90 : i32 to index
    %c0_91 = arith.constant 0 : index
    %c0_92 = arith.constant 0 : index
    %265 = vector.load %arg13[%264, %c0_91, %c0_92] : memref<8x8x128xf32, #tpu.memory_space<vmem>>, vector<1x8x128xf32>
    %266 = vector.shape_cast %265 : vector<1x8x128xf32> to vector<8x128xf32>
    %cst_93 = arith.constant dense<0.000000e+00> : vector<8x128xf32>
    %267 = tpu.matmul %259, %207, %cst_93 {dimension_numbers = #tpu.dot_dimension_numbers<[1], [0], [0], [1], [0, 0, 1, 1], [], []>} : vector<8x32xf32>, vector<32x128xf32>, vector<8x128xf32> -> vector<8x128xf32>
    %268 = arith.addf %266, %267 : vector<8x128xf32>
    %269 = arith.negf %268 : vector<8x128xf32>
    %270 = math.exp %269 : vector<8x128xf32>
    %cst_94 = arith.constant 1.000000e+00 : f32
    %271 = vector.broadcast %cst_94 : f32 to vector<8x128xf32>
    %272 = arith.addf %271, %270 : vector<8x128xf32>
    %273 = arith.divf %271, %272 : vector<8x128xf32>
    %274 = math.tanh %268 : vector<8x128xf32>
    %275 = vector.extract_strided_slice %273 {offsets = [0, 0], sizes = [8, 32], strides = [1, 1]} : vector<8x128xf32> to vector<8x32xf32>
    %276 = vector.extract_strided_slice %273 {offsets = [0, 32], sizes = [8, 32], strides = [1, 1]} : vector<8x128xf32> to vector<8x32xf32>
    %277 = vector.extract_strided_slice %274 {offsets = [0, 64], sizes = [8, 32], strides = [1, 1]} : vector<8x128xf32> to vector<8x32xf32>
    %278 = vector.extract_strided_slice %273 {offsets = [0, 96], sizes = [8, 32], strides = [1, 1]} : vector<8x128xf32> to vector<8x32xf32>
    %279 = arith.mulf %276, %257 : vector<8x32xf32>
    %280 = arith.mulf %275, %277 : vector<8x32xf32>
    %281 = arith.addf %279, %280 : vector<8x32xf32>
    %282 = math.tanh %281 : vector<8x32xf32>
    %283 = arith.mulf %278, %282 : vector<8x32xf32>
    %284 = arith.index_cast %c2_i32_90 : i32 to index
    %c0_95 = arith.constant 0 : index
    %c0_96 = arith.constant 0 : index
    %285 = vector.load %arg12[%284, %c0_95, %c0_96] : memref<8x8x32xf32, #tpu.memory_space<vmem>>, vector<1x8x32xf32>
    %286 = vector.shape_cast %285 : vector<1x8x32xf32> to vector<8x32xf32>
    %287 = vector.shape_cast %283 : vector<8x32xf32> to vector<1x8x32xf32>
    tpu.vector_store %arg12[%284, %c0_95, %c0_96], %287 {strides = array<i32>} : memref<8x8x32xf32, #tpu.memory_space<vmem>>, vector<1x8x32xf32>,
    %c3_i32_97 = arith.constant 3 : i32
    %288 = arith.index_cast %c3_i32_97 : i32 to index
    %c0_98 = arith.constant 0 : index
    %c0_99 = arith.constant 0 : index
    %289 = vector.load %arg13[%288, %c0_98, %c0_99] : memref<8x8x128xf32, #tpu.memory_space<vmem>>, vector<1x8x128xf32>
    %290 = vector.shape_cast %289 : vector<1x8x128xf32> to vector<8x128xf32>
    %cst_100 = arith.constant dense<0.000000e+00> : vector<8x128xf32>
    %291 = tpu.matmul %283, %207, %cst_100 {dimension_numbers = #tpu.dot_dimension_numbers<[1], [0], [0], [1], [0, 0, 1, 1], [], []>} : vector<8x32xf32>, vector<32x128xf32>, vector<8x128xf32> -> vector<8x128xf32>
    %292 = arith.addf %290, %291 : vector<8x128xf32>
    %293 = arith.negf %292 : vector<8x128xf32>
    %294 = math.exp %293 : vector<8x128xf32>
    %cst_101 = arith.constant 1.000000e+00 : f32
    %295 = vector.broadcast %cst_101 : f32 to vector<8x128xf32>
    %296 = arith.addf %295, %294 : vector<8x128xf32>
    %297 = arith.divf %295, %296 : vector<8x128xf32>
    %298 = math.tanh %292 : vector<8x128xf32>
    %299 = vector.extract_strided_slice %297 {offsets = [0, 0], sizes = [8, 32], strides = [1, 1]} : vector<8x128xf32> to vector<8x32xf32>
    %300 = vector.extract_strided_slice %297 {offsets = [0, 32], sizes = [8, 32], strides = [1, 1]} : vector<8x128xf32> to vector<8x32xf32>
    %301 = vector.extract_strided_slice %298 {offsets = [0, 64], sizes = [8, 32], strides = [1, 1]} : vector<8x128xf32> to vector<8x32xf32>
    %302 = vector.extract_strided_slice %297 {offsets = [0, 96], sizes = [8, 32], strides = [1, 1]} : vector<8x128xf32> to vector<8x32xf32>
    %303 = arith.mulf %300, %281 : vector<8x32xf32>
    %304 = arith.mulf %299, %301 : vector<8x32xf32>
    %305 = arith.addf %303, %304 : vector<8x32xf32>
    %306 = math.tanh %305 : vector<8x32xf32>
    %307 = arith.mulf %302, %306 : vector<8x32xf32>
    %308 = arith.index_cast %c3_i32_97 : i32 to index
    %c0_102 = arith.constant 0 : index
    %c0_103 = arith.constant 0 : index
    %309 = vector.load %arg12[%308, %c0_102, %c0_103] : memref<8x8x32xf32, #tpu.memory_space<vmem>>, vector<1x8x32xf32>
    %310 = vector.shape_cast %309 : vector<1x8x32xf32> to vector<8x32xf32>
    %311 = vector.shape_cast %307 : vector<8x32xf32> to vector<1x8x32xf32>
    tpu.vector_store %arg12[%308, %c0_102, %c0_103], %311 {strides = array<i32>} : memref<8x8x32xf32, #tpu.memory_space<vmem>>, vector<1x8x32xf32>,
    %c4_i32_104 = arith.constant 4 : i32
    %312 = arith.index_cast %c4_i32_104 : i32 to index
    %c0_105 = arith.constant 0 : index
    %c0_106 = arith.constant 0 : index
    %313 = vector.load %arg13[%312, %c0_105, %c0_106] : memref<8x8x128xf32, #tpu.memory_space<vmem>>, vector<1x8x128xf32>
    %314 = vector.shape_cast %313 : vector<1x8x128xf32> to vector<8x128xf32>
    %cst_107 = arith.constant dense<0.000000e+00> : vector<8x128xf32>
    %315 = tpu.matmul %307, %207, %cst_107 {dimension_numbers = #tpu.dot_dimension_numbers<[1], [0], [0], [1], [0, 0, 1, 1], [], []>} : vector<8x32xf32>, vector<32x128xf32>, vector<8x128xf32> -> vector<8x128xf32>
    %316 = arith.addf %314, %315 : vector<8x128xf32>
    %317 = arith.negf %316 : vector<8x128xf32>
    %318 = math.exp %317 : vector<8x128xf32>
    %cst_108 = arith.constant 1.000000e+00 : f32
    %319 = vector.broadcast %cst_108 : f32 to vector<8x128xf32>
    %320 = arith.addf %319, %318 : vector<8x128xf32>
    %321 = arith.divf %319, %320 : vector<8x128xf32>
    %322 = math.tanh %316 : vector<8x128xf32>
    %323 = vector.extract_strided_slice %321 {offsets = [0, 0], sizes = [8, 32], strides = [1, 1]} : vector<8x128xf32> to vector<8x32xf32>
    %324 = vector.extract_strided_slice %321 {offsets = [0, 32], sizes = [8, 32], strides = [1, 1]} : vector<8x128xf32> to vector<8x32xf32>
    %325 = vector.extract_strided_slice %322 {offsets = [0, 64], sizes = [8, 32], strides = [1, 1]} : vector<8x128xf32> to vector<8x32xf32>
    %326 = vector.extract_strided_slice %321 {offsets = [0, 96], sizes = [8, 32], strides = [1, 1]} : vector<8x128xf32> to vector<8x32xf32>
    %327 = arith.mulf %324, %305 : vector<8x32xf32>
    %328 = arith.mulf %323, %325 : vector<8x32xf32>
    %329 = arith.addf %327, %328 : vector<8x32xf32>
    %330 = math.tanh %329 : vector<8x32xf32>
    %331 = arith.mulf %326, %330 : vector<8x32xf32>
    %332 = arith.index_cast %c4_i32_104 : i32 to index
    %c0_109 = arith.constant 0 : index
    %c0_110 = arith.constant 0 : index
    %333 = vector.load %arg12[%332, %c0_109, %c0_110] : memref<8x8x32xf32, #tpu.memory_space<vmem>>, vector<1x8x32xf32>
    %334 = vector.shape_cast %333 : vector<1x8x32xf32> to vector<8x32xf32>
    %335 = vector.shape_cast %331 : vector<8x32xf32> to vector<1x8x32xf32>
    tpu.vector_store %arg12[%332, %c0_109, %c0_110], %335 {strides = array<i32>} : memref<8x8x32xf32, #tpu.memory_space<vmem>>, vector<1x8x32xf32>,
    %c5_i32_111 = arith.constant 5 : i32
    %336 = arith.index_cast %c5_i32_111 : i32 to index
    %c0_112 = arith.constant 0 : index
    %c0_113 = arith.constant 0 : index
    %337 = vector.load %arg13[%336, %c0_112, %c0_113] : memref<8x8x128xf32, #tpu.memory_space<vmem>>, vector<1x8x128xf32>
    %338 = vector.shape_cast %337 : vector<1x8x128xf32> to vector<8x128xf32>
    %cst_114 = arith.constant dense<0.000000e+00> : vector<8x128xf32>
    %339 = tpu.matmul %331, %207, %cst_114 {dimension_numbers = #tpu.dot_dimension_numbers<[1], [0], [0], [1], [0, 0, 1, 1], [], []>} : vector<8x32xf32>, vector<32x128xf32>, vector<8x128xf32> -> vector<8x128xf32>
    %340 = arith.addf %338, %339 : vector<8x128xf32>
    %341 = arith.negf %340 : vector<8x128xf32>
    %342 = math.exp %341 : vector<8x128xf32>
    %cst_115 = arith.constant 1.000000e+00 : f32
    %343 = vector.broadcast %cst_115 : f32 to vector<8x128xf32>
    %344 = arith.addf %343, %342 : vector<8x128xf32>
    %345 = arith.divf %343, %344 : vector<8x128xf32>
    %346 = math.tanh %340 : vector<8x128xf32>
    %347 = vector.extract_strided_slice %345 {offsets = [0, 0], sizes = [8, 32], strides = [1, 1]} : vector<8x128xf32> to vector<8x32xf32>
    %348 = vector.extract_strided_slice %345 {offsets = [0, 32], sizes = [8, 32], strides = [1, 1]} : vector<8x128xf32> to vector<8x32xf32>
    %349 = vector.extract_strided_slice %346 {offsets = [0, 64], sizes = [8, 32], strides = [1, 1]} : vector<8x128xf32> to vector<8x32xf32>
    %350 = vector.extract_strided_slice %345 {offsets = [0, 96], sizes = [8, 32], strides = [1, 1]} : vector<8x128xf32> to vector<8x32xf32>
    %351 = arith.mulf %348, %329 : vector<8x32xf32>
    %352 = arith.mulf %347, %349 : vector<8x32xf32>
    %353 = arith.addf %351, %352 : vector<8x32xf32>
    %354 = math.tanh %353 : vector<8x32xf32>
    %355 = arith.mulf %350, %354 : vector<8x32xf32>
    %356 = arith.index_cast %c5_i32_111 : i32 to index
    %c0_116 = arith.constant 0 : index
    %c0_117 = arith.constant 0 : index
    %357 = vector.load %arg12[%356, %c0_116, %c0_117] : memref<8x8x32xf32, #tpu.memory_space<vmem>>, vector<1x8x32xf32>
    %358 = vector.shape_cast %357 : vector<1x8x32xf32> to vector<8x32xf32>
    %359 = vector.shape_cast %355 : vector<8x32xf32> to vector<1x8x32xf32>
    tpu.vector_store %arg12[%356, %c0_116, %c0_117], %359 {strides = array<i32>} : memref<8x8x32xf32, #tpu.memory_space<vmem>>, vector<1x8x32xf32>,
    %c6_i32_118 = arith.constant 6 : i32
    %360 = arith.index_cast %c6_i32_118 : i32 to index
    %c0_119 = arith.constant 0 : index
    %c0_120 = arith.constant 0 : index
    %361 = vector.load %arg13[%360, %c0_119, %c0_120] : memref<8x8x128xf32, #tpu.memory_space<vmem>>, vector<1x8x128xf32>
    %362 = vector.shape_cast %361 : vector<1x8x128xf32> to vector<8x128xf32>
    %cst_121 = arith.constant dense<0.000000e+00> : vector<8x128xf32>
    %363 = tpu.matmul %355, %207, %cst_121 {dimension_numbers = #tpu.dot_dimension_numbers<[1], [0], [0], [1], [0, 0, 1, 1], [], []>} : vector<8x32xf32>, vector<32x128xf32>, vector<8x128xf32> -> vector<8x128xf32>
    %364 = arith.addf %362, %363 : vector<8x128xf32>
    %365 = arith.negf %364 : vector<8x128xf32>
    %366 = math.exp %365 : vector<8x128xf32>
    %cst_122 = arith.constant 1.000000e+00 : f32
    %367 = vector.broadcast %cst_122 : f32 to vector<8x128xf32>
    %368 = arith.addf %367, %366 : vector<8x128xf32>
    %369 = arith.divf %367, %368 : vector<8x128xf32>
    %370 = math.tanh %364 : vector<8x128xf32>
    %371 = vector.extract_strided_slice %369 {offsets = [0, 0], sizes = [8, 32], strides = [1, 1]} : vector<8x128xf32> to vector<8x32xf32>
    %372 = vector.extract_strided_slice %369 {offsets = [0, 32], sizes = [8, 32], strides = [1, 1]} : vector<8x128xf32> to vector<8x32xf32>
    %373 = vector.extract_strided_slice %370 {offsets = [0, 64], sizes = [8, 32], strides = [1, 1]} : vector<8x128xf32> to vector<8x32xf32>
    %374 = vector.extract_strided_slice %369 {offsets = [0, 96], sizes = [8, 32], strides = [1, 1]} : vector<8x128xf32> to vector<8x32xf32>
    %375 = arith.mulf %372, %353 : vector<8x32xf32>
    %376 = arith.mulf %371, %373 : vector<8x32xf32>
    %377 = arith.addf %375, %376 : vector<8x32xf32>
    %378 = math.tanh %377 : vector<8x32xf32>
    %379 = arith.mulf %374, %378 : vector<8x32xf32>
    %380 = arith.index_cast %c6_i32_118 : i32 to index
    %c0_123 = arith.constant 0 : index
    %c0_124 = arith.constant 0 : index
    %381 = vector.load %arg12[%380, %c0_123, %c0_124] : memref<8x8x32xf32, #tpu.memory_space<vmem>>, vector<1x8x32xf32>
    %382 = vector.shape_cast %381 : vector<1x8x32xf32> to vector<8x32xf32>
    %383 = vector.shape_cast %379 : vector<8x32xf32> to vector<1x8x32xf32>
    tpu.vector_store %arg12[%380, %c0_123, %c0_124], %383 {strides = array<i32>} : memref<8x8x32xf32, #tpu.memory_space<vmem>>, vector<1x8x32xf32>,
    %c7_i32_125 = arith.constant 7 : i32
    %384 = arith.index_cast %c7_i32_125 : i32 to index
    %c0_126 = arith.constant 0 : index
    %c0_127 = arith.constant 0 : index
    %385 = vector.load %arg13[%384, %c0_126, %c0_127] : memref<8x8x128xf32, #tpu.memory_space<vmem>>, vector<1x8x128xf32>
    %386 = vector.shape_cast %385 : vector<1x8x128xf32> to vector<8x128xf32>
    %cst_128 = arith.constant dense<0.000000e+00> : vector<8x128xf32>
    %387 = tpu.matmul %379, %207, %cst_128 {dimension_numbers = #tpu.dot_dimension_numbers<[1], [0], [0], [1], [0, 0, 1, 1], [], []>} : vector<8x32xf32>, vector<32x128xf32>, vector<8x128xf32> -> vector<8x128xf32>
    %388 = arith.addf %386, %387 : vector<8x128xf32>
    %389 = arith.negf %388 : vector<8x128xf32>
    %390 = math.exp %389 : vector<8x128xf32>
    %cst_129 = arith.constant 1.000000e+00 : f32
    %391 = vector.broadcast %cst_129 : f32 to vector<8x128xf32>
    %392 = arith.addf %391, %390 : vector<8x128xf32>
    %393 = arith.divf %391, %392 : vector<8x128xf32>
    %394 = math.tanh %388 : vector<8x128xf32>
    %395 = vector.extract_strided_slice %393 {offsets = [0, 0], sizes = [8, 32], strides = [1, 1]} : vector<8x128xf32> to vector<8x32xf32>
    %396 = vector.extract_strided_slice %393 {offsets = [0, 32], sizes = [8, 32], strides = [1, 1]} : vector<8x128xf32> to vector<8x32xf32>
    %397 = vector.extract_strided_slice %394 {offsets = [0, 64], sizes = [8, 32], strides = [1, 1]} : vector<8x128xf32> to vector<8x32xf32>
    %398 = vector.extract_strided_slice %393 {offsets = [0, 96], sizes = [8, 32], strides = [1, 1]} : vector<8x128xf32> to vector<8x32xf32>
    %399 = arith.mulf %396, %377 : vector<8x32xf32>
    %400 = arith.mulf %395, %397 : vector<8x32xf32>
    %401 = arith.addf %399, %400 : vector<8x32xf32>
    %402 = math.tanh %401 : vector<8x32xf32>
    %403 = arith.mulf %398, %402 : vector<8x32xf32>
    %404 = arith.index_cast %c7_i32_125 : i32 to index
    %c0_130 = arith.constant 0 : index
    %c0_131 = arith.constant 0 : index
    %405 = vector.load %arg12[%404, %c0_130, %c0_131] : memref<8x8x32xf32, #tpu.memory_space<vmem>>, vector<1x8x32xf32>
    %406 = vector.shape_cast %405 : vector<1x8x32xf32> to vector<8x32xf32>
    %407 = vector.shape_cast %403 : vector<8x32xf32> to vector<1x8x32xf32>
    tpu.vector_store %arg12[%404, %c0_130, %c0_131], %407 {strides = array<i32>} : memref<8x8x32xf32, #tpu.memory_space<vmem>>, vector<1x8x32xf32>,
    %c8_i32_132 = arith.constant 8 : i32
    %c0_133 = arith.constant 0 : index
    %c0_134 = arith.constant 0 : index
    %408 = vector.load %arg7[%c0_133, %c0_134] : memref<32x32xf32, #tpu.memory_space<vmem>>, vector<32x32xf32>
    %cst_135 = arith.constant dense<0.000000e+00> : vector<8x32xf32>
    %409 = tpu.matmul %403, %408, %cst_135 {dimension_numbers = #tpu.dot_dimension_numbers<[1], [0], [0], [1], [0, 0, 1, 1], [], []>} : vector<8x32xf32>, vector<32x32xf32>, vector<8x32xf32> -> vector<8x32xf32>
    %c0_136 = arith.constant 0 : index
    %c0_137 = arith.constant 0 : index
    %410 = vector.load %arg8[%c0_136, %c0_137] : memref<1x32xf32, #tpu.memory_space<vmem>>, vector<1x32xf32>
    %411 = vector.broadcast %410 : vector<1x32xf32> to vector<8x32xf32>
    %412 = arith.addf %409, %411 : vector<8x32xf32>
    %cst_138 = arith.constant 0.000000e+00 : f32
    %413 = vector.broadcast %cst_138 : f32 to vector<8x32xf32>
    %414 = arith.cmpf ogt, %412, %413 : vector<8x32xf32>
    %cst_139 = arith.constant 0.00999999977 : f32
    %415 = vector.broadcast %cst_139 : f32 to vector<8x32xf32>
    %416 = arith.mulf %415, %412 : vector<8x32xf32>
    %417 = arith.select %414, %412, %416 : vector<8x32xi1>, vector<8x32xf32>
    %c0_140 = arith.constant 0 : index
    %c0_141 = arith.constant 0 : index
    %418 = vector.load %arg9[%c0_140, %c0_141] : memref<32x128xf32, #tpu.memory_space<vmem>>, vector<32x128xf32>
    %cst_142 = arith.constant dense<0.000000e+00> : vector<8x128xf32>
    %419 = tpu.matmul %417, %418, %cst_142 {dimension_numbers = #tpu.dot_dimension_numbers<[1], [0], [0], [1], [0, 0, 1, 1], [], []>} : vector<8x32xf32>, vector<32x128xf32>, vector<8x128xf32> -> vector<8x128xf32>
    %c0_143 = arith.constant 0 : index
    %c0_144 = arith.constant 0 : index
    %420 = vector.load %arg10[%c0_143, %c0_144] : memref<1x128xf32, #tpu.memory_space<vmem>>, vector<1x128xf32>
    %421 = vector.broadcast %420 : vector<1x128xf32> to vector<8x128xf32>
    %422 = arith.addf %419, %421 : vector<8x128xf32>
    %c0_145 = arith.constant 0 : index
    %c0_146 = arith.constant 0 : index
    %423 = vector.load %arg11[%c0_145, %c0_146] : memref<8x128xf32, #tpu.memory_space<vmem>>, vector<8x128xf32>
    tpu.vector_store %arg11[%c0_145, %c0_146], %422 {strides = array<i32>} : memref<8x128xf32, #tpu.memory_space<vmem>>, vector<8x128xf32>,
    return
  }
}

</mosaic_0001>

<llo_original>
// kernel: tpu_custom_call.1
$region0: #{tpu_custom_call.1}
  #allocation0 [shape = 'u32[]', space=smem, size = 0x4, offset = 0x4, fixed_abs, tag = 'smem constant byte address 0x4 - core index']
  #allocation1 [shape = 'u32[144,128]{1,0:T(1,128)}', space=vmem, size = 0x12000, scoped, tag = 'internal scratch']
  #allocation2 [shape = 'f32[8,8,32]{2,1,0:T(8,128)}', space=vmem, size = 0x8000, scoped, tag = 'scratch operand']
  #allocation3 [shape = 'f32[8,8,128]{2,1,0:T(8,128)}', space=vmem, size = 0x8000, scoped, tag = 'scratch operand']
  %s0 = inlined_call_operand.hbm [shape: f32[8,8,16], index: 0, kind: input, shape index: {}]
  %s1 = inlined_call_operand.hbm [shape: f32[16,128], index: 1, kind: input, shape index: {}]
  %s2 = inlined_call_operand.hbm [shape: f32[32,128], index: 2, kind: input, shape index: {}]
  %s3 = inlined_call_operand.vmem [shape: f32[1,128], index: 3, kind: input, shape index: {}]
  %s4 = inlined_call_operand.hbm [shape: f32[32,128], index: 4, kind: input, shape index: {}]
  %s5 = inlined_call_operand.hbm [shape: f32[32,128], index: 5, kind: input, shape index: {}]
  %s6 = inlined_call_operand.vmem [shape: f32[1,128], index: 6, kind: input, shape index: {}]
  %s7 = inlined_call_operand.hbm [shape: f32[32,32], index: 7, kind: input, shape index: {}]
  %s8 = inlined_call_operand.hbm [shape: f32[1,32], index: 8, kind: input, shape index: {}]
  %s9 = inlined_call_operand.vmem [shape: f32[32,128], index: 9, kind: input, shape index: {}]
  %s10 = inlined_call_operand.vmem [shape: f32[1,128], index: 10, kind: input, shape index: {}]
  %s11 = inlined_call_operand.hbm [shape: f32[8,128], index: 11, kind: output, shape index: {}]
  %s12 = sld [smem:[#allocation0]]
  $region82: #{tpu_custom_call.1} parent=0
    _
  %s14 = ssub.s32 1, %s12
  %s15 = scalar_select 0, %s14, %s12
  $region1: #{tpu_custom_call.1} parent=0
    #allocation4 [shape = 'u8[32768]{0}', space=vmem, size = 0x8000, scoped, tag = 'input window, operand 0, single buffered']
    #allocation5 [shape = 's32[1]{0}', space=sflag, size = 0x4, scoped, tag = 'scoped memory for tpu_custom_call.1']
    #allocation6 [shape = 's32[1]{0}', space=sflag, size = 0x4, scoped, tag = 'scoped memory for tpu_custom_call.1']
    #allocation7 [shape = 'u8[8192]{0}', space=vmem, size = 0x2000, scoped, tag = 'input window, operand 1, single buffered']
    #allocation8 [shape = 's32[1]{0}', space=sflag, size = 0x4, scoped, tag = 'scoped memory for tpu_custom_call.1']
    #allocation9 [shape = 'u8[16384]{0}', space=vmem, size = 0x4000, scoped, tag = 'input window, operand 2, single buffered']
    #allocation10 [shape = 'u8[16384]{0}', space=vmem, size = 0x4000, scoped, tag = 'input window, operand 4, single buffered']
    #allocation11 [shape = 's32[1]{0}', space=sflag, size = 0x4, scoped, tag = 'scoped memory for tpu_custom_call.1']
    #allocation12 [shape = 'u8[16384]{0}', space=vmem, size = 0x4000, scoped, tag = 'input window, operand 5, single buffered']
    #allocation13 [shape = 'u8[16384]{0}', space=vmem, size = 0x4000, scoped, tag = 'input window, operand 7, single buffered']
    #allocation14 [shape = 's32[1]{0}', space=sflag, size = 0x4, scoped, tag = 'scoped memory for tpu_custom_call.1']
    #allocation15 [shape = 'u8[512]{0}', space=vmem, size = 0x400, scoped, tag = 'input window, operand 8, single buffered']
    #allocation16 [shape = 'u8[4096]{0}', space=vmem, size = 0x1000, scoped, tag = 'output window, operand 0, single buffered']
    %16 = vsyncpa [#allocation5], 0
    %17 = vsyncpa [#allocation8], 0
    %18 = vsyncpa [#allocation11], 0
    %19 = vsyncpa [#allocation14], 0
    %20 = vsyncpa [#allocation6], 0
    // Predicated region
    $region2: #{tpu_custom_call.1} parent=1 // pred_check
      _
    $region3: #{tpu_custom_call.1} parent=1 // pred_check_branch
      %22 = sbr.rel (0) target = $region5
    $region4: #{tpu_custom_call.1} parent=1 // pred_region
      %s24 = ssub.s32 1024, 1024
      %25 = vsyncadd [#allocation5], %s24
      %s26 = sshll.u32 [#allocation4], 4
      %s27 = int_to_ptr.vmem [resolvable:$true] %s26
      %32 = dma.hbm_to_vmem [thread:$0]  %s0, 1024, %s27, [#allocation5], 128, 128, 8
    $region5: #{tpu_custom_call.1} parent=1 // pred_fallthru
      _
    // Predicated region
    $region6: #{tpu_custom_call.1} parent=1 // pred_check
      _
    $region7: #{tpu_custom_call.1} parent=1 // pred_check_branch
      %34 = sbr.rel (0) target = $region9
    $region8: #{tpu_custom_call.1} parent=1 // pred_region
      %s36 = ssub.s32 256, 256
      %37 = vsyncadd [#allocation8], %s36
      %s38 = sshll.u32 [#allocation7], 4
      %s39 = int_to_ptr.vmem [resolvable:$true] %s38
      %44 = dma.hbm_to_vmem [thread:$0]  %s1, 256, %s39, [#allocation8], 128, 128, 8
    $region9: #{tpu_custom_call.1} parent=1 // pred_fallthru
      _
    // Predicated region
    $region10: #{tpu_custom_call.1} parent=1 // pred_check
      _
    $region11: #{tpu_custom_call.1} parent=1 // pred_check_branch
      %46 = sbr.rel (0) target = $region13
    $region12: #{tpu_custom_call.1} parent=1 // pred_region
      %s48 = ssub.s32 512, 512
      %49 = vsyncadd [#allocation8], %s48
      %s50 = sshll.u32 [#allocation9], 4
      %s51 = int_to_ptr.vmem [resolvable:$true] %s50
      %56 = dma.hbm_to_vmem [thread:$0]  %s2, 512, %s51, [#allocation8], 128, 128, 8
    $region13: #{tpu_custom_call.1} parent=1 // pred_fallthru
      _
    // Predicated region
    $region14: #{tpu_custom_call.1} parent=1 // pred_check
      _
    $region15: #{tpu_custom_call.1} parent=1 // pred_check_branch
      %58 = sbr.rel (0) target = $region17
    $region16: #{tpu_custom_call.1} parent=1 // pred_region
      _
    $region17: #{tpu_custom_call.1} parent=1 // pred_fallthru
      _
    // Predicated region
    $region18: #{tpu_custom_call.1} parent=1 // pred_check
      _
    $region19: #{tpu_custom_call.1} parent=1 // pred_check_branch
      %60 = sbr.rel (0) target = $region21
    $region20: #{tpu_custom_call.1} parent=1 // pred_region
      %s62 = ssub.s32 512, 512
      %63 = vsyncadd [#allocation11], %s62
      %s64 = sshll.u32 [#allocation10], 4
      %s65 = int_to_ptr.vmem [resolvable:$true] %s64
      %70 = dma.hbm_to_vmem [thread:$0]  %s4, 512, %s65, [#allocation11], 128, 128, 8
    $region21: #{tpu_custom_call.1} parent=1 // pred_fallthru
      _
    // Predicated region
    $region22: #{tpu_custom_call.1} parent=1 // pred_check
      _
    $region23: #{tpu_custom_call.1} parent=1 // pred_check_branch
      %72 = sbr.rel (0) target = $region25
    $region24: #{tpu_custom_call.1} parent=1 // pred_region
      %s74 = ssub.s32 512, 512
      %75 = vsyncadd [#allocation11], %s74
      %s76 = sshll.u32 [#allocation12], 4
      %s77 = int_to_ptr.vmem [resolvable:$true] %s76
      %82 = dma.hbm_to_vmem [thread:$0]  %s5, 512, %s77, [#allocation11], 128, 128, 8
    $region25: #{tpu_custom_call.1} parent=1 // pred_fallthru
      _
    // Predicated region
    $region26: #{tpu_custom_call.1} parent=1 // pred_check
      _
    $region27: #{tpu_custom_call.1} parent=1 // pred_check_branch
      %84 = sbr.rel (0) target = $region29
    $region28: #{tpu_custom_call.1} parent=1 // pred_region
      _
    $region29: #{tpu_custom_call.1} parent=1 // pred_fallthru
      _
    // Predicated region
    $region30: #{tpu_custom_call.1} parent=1 // pred_check
      _
    $region31: #{tpu_custom_call.1} parent=1 // pred_check_branch
      %86 = sbr.rel (0) target = $region33
    $region32: #{tpu_custom_call.1} parent=1 // pred_region
      %s88 = ssub.s32 512, 512
      %89 = vsyncadd [#allocation14], %s88
      %s90 = sshll.u32 [#allocation13], 4
      %s91 = int_to_ptr.vmem [resolvable:$true] %s90
      %96 = dma.hbm_to_vmem [thread:$0]  %s7, 512, %s91, [#allocation14], 128, 128, 8
    $region33: #{tpu_custom_call.1} parent=1 // pred_fallthru
      _
    // Predicated region
    $region34: #{tpu_custom_call.1} parent=1 // pred_check
      _
    $region35: #{tpu_custom_call.1} parent=1 // pred_check_branch
      %98 = sbr.rel (0) target = $region37
    $region36: #{tpu_custom_call.1} parent=1 // pred_region
      %s100 = ssub.s32 16, 16
      %101 = vsyncadd [#allocation14], %s100
      %s103 = sshll.u32 [#allocation15], 4
      %s104 = int_to_ptr.vmem [resolvable:$true] %s103
      %106 = dma.hbm_to_vmem [thread:$0]  %s8, 16, %s104, [#allocation14]
    $region37: #{tpu_custom_call.1} parent=1 // pred_fallthru
      _
    // Predicated region
    $region38: #{tpu_custom_call.1} parent=1 // pred_check
      _
    $region39: #{tpu_custom_call.1} parent=1 // pred_check_branch
      %108 = sbr.rel (0) target = $region41
    $region40: #{tpu_custom_call.1} parent=1 // pred_region
      _
    $region41: #{tpu_custom_call.1} parent=1 // pred_fallthru
      _
    // Predicated region
    $region42: #{tpu_custom_call.1} parent=1 // pred_check
      _
    $region43: #{tpu_custom_call.1} parent=1 // pred_check_branch
      %110 = sbr.rel (0) target = $region45
    $region44: #{tpu_custom_call.1} parent=1 // pred_region
      _
    $region45: #{tpu_custom_call.1} parent=1 // pred_fallthru
      _
    // Predicated region
    $region46: #{tpu_custom_call.1} parent=1 // pred_check
      _
    $region47: #{tpu_custom_call.1} parent=1 // pred_check_branch
      %112 = sbr.rel (0) target = $region49
    $region48: #{tpu_custom_call.1} parent=1 // pred_region
      %113 = dma.done [#allocation5], 1024
    $region49: #{tpu_custom_call.1} parent=1 // pred_fallthru
      _
    // Predicated region
    $region50: #{tpu_custom_call.1} parent=1 // pred_check
      _
    $region51: #{tpu_custom_call.1} parent=1 // pred_check_branch
      %115 = sbr.rel (0) target = $region53
    $region52: #{tpu_custom_call.1} parent=1 // pred_region
      %116 = dma.done [#allocation8], 256
    $region53: #{tpu_custom_call.1} parent=1 // pred_fallthru
      _
    // Predicated region
    $region54: #{tpu_custom_call.1} parent=1 // pred_check
      _
    $region55: #{tpu_custom_call.1} parent=1 // pred_check_branch
      %118 = sbr.rel (0) target = $region57
    $region56: #{tpu_custom_call.1} parent=1 // pred_region
      %119 = dma.done [#allocation8], 512
    $region57: #{tpu_custom_call.1} parent=1 // pred_fallthru
      _
    // Predicated region
    $region58: #{tpu_custom_call.1} parent=1 // pred_check
      _
    $region59: #{tpu_custom_call.1} parent=1 // pred_check_branch
      %121 = sbr.rel (0) target = $region61
    $region60: #{tpu_custom_call.1} parent=1 // pred_region
      %122 = dma.done [#allocation11], 512
    $region61: #{tpu_custom_call.1} parent=1 // pred_fallthru
      _
    // Predicated region
    $region62: #{tpu_custom_call.1} parent=1 // pred_check
      _
    $region63: #{tpu_custom_call.1} parent=1 // pred_check_branch
      %124 = sbr.rel (0) target = $region65
    $region64: #{tpu_custom_call.1} parent=1 // pred_region
      %125 = dma.done [#allocation11], 512
    $region65: #{tpu_custom_call.1} parent=1 // pred_fallthru
      _
    // Predicated region
    $region66: #{tpu_custom_call.1} parent=1 // pred_check
      _
    $region67: #{tpu_custom_call.1} parent=1 // pred_check_branch
      %127 = sbr.rel (0) target = $region69
    $region68: #{tpu_custom_call.1} parent=1 // pred_region
      %128 = dma.done [#allocation14], 512
    $region69: #{tpu_custom_call.1} parent=1 // pred_fallthru
      _
    // Predicated region
    $region70: #{tpu_custom_call.1} parent=1 // pred_check
      _
    $region71: #{tpu_custom_call.1} parent=1 // pred_check_branch
      %130 = sbr.rel (0) target = $region73
    $region72: #{tpu_custom_call.1} parent=1 // pred_region
      %131 = dma.done [#allocation14], 16
    $region73: #{tpu_custom_call.1} parent=1 // pred_fallthru
      _
    %v132 = vld [vmem:[#allocation4] sm:$0xff]
    %v133 = vld [vmem:[#allocation4 + $0x8] sm:$0xff]
    %v134 = vld [vmem:[#allocation4 + $0x10] sm:$0xff]
    %v135 = vld [vmem:[#allocation4 + $0x18] sm:$0xff]
    %v136 = vld [vmem:[#allocation4 + $0x20] sm:$0xff]
    %v137 = vld [vmem:[#allocation4 + $0x28] sm:$0xff]
    %v138 = vld [vmem:[#allocation4 + $0x30] sm:$0xff]
    %v139 = vld [vmem:[#allocation4 + $0x38] sm:$0xff]
    %v140 = vld [vmem:[#allocation7] sm:$0xff]
    %v141 = vld [vmem:[#allocation7 + $0x8] sm:$0xff]
    %v142 = vld [vmem:[#allocation9] sm:$0xff]
    %v143 = vld [vmem:[#allocation9 + $0x8] sm:$0xff]
    %v144 = vld [vmem:[#allocation9 + $0x10] sm:$0xff]
    %v145 = vld [vmem:[#allocation9 + $0x18] sm:$0xff]
    %v146 = vld [vmem:[%s3] sm:$0x1]
    %v148 = vlaneseq
    %v149 = vshrl.u32 %v148, 7
    %v150 = vsub.s32 0, %v149
    %v151 = vrot.slane %v146, %v150
    %vm153 = vcmask 130048
    %v155 = vsel %vm153, %v132, 0
    %v158 = vsel %vm153, %v133, 0
    %v161 = vsel %vm153, %v134, 0
    %v164 = vsel %vm153, %v135, 0
    %v167 = vsel %vm153, %v136, 0
    %v170 = vsel %vm153, %v137, 0
    %v173 = vsel %vm153, %v138, 0
    %v176 = vsel %vm153, %v139, 0
    %178 = vmatprep.subr.mxu0 0.0
    %179 = vmatpush1.msra.mxu0 %v140
    %180 = vmatprep.subr.mxu0 0.0
    %181 = vmatpush1.msra.mxu0 %v141
    %182 = vmatprep.subr.mxu0 0.0
    %183 = vmatpush1.msra.mxu0 0.0
    %184 = vmatprep.subr.mxu0 0.0
    %185 = vmatpush1.msra.mxu0 0.0
    %186 = vmatprep.subr.mxu0 0.0
    %187 = vmatpush1.msra.mxu0 0.0
    %188 = vmatprep.subr.mxu0 0.0
    %189 = vmatpush1.msra.mxu0 0.0
    %190 = vmatprep.subr.mxu0 0.0
    %191 = vmatpush1.msra.mxu0 0.0
    %192 = vmatprep.subr.mxu0 0.0
    %193 = vmatpush1.msra.mxu0 0.0
    %194 = vmatprep.subr.mxu0 0.0
    %195 = vmatpush1.msra.mxu0 0.0
    %196 = vmatprep.subr.mxu0 0.0
    %197 = vmatpush1.msra.mxu0 0.0
    %198 = vmatprep.subr.mxu0 0.0
    %199 = vmatpush1.msra.mxu0 0.0
    %200 = vmatprep.subr.mxu0 0.0
    %201 = vmatpush1.msra.mxu0 0.0
    %202 = vmatprep.subr.mxu0 0.0
    %203 = vmatpush1.msra.mxu0 0.0
    %204 = vmatprep.subr.mxu0 0.0
    %205 = vmatpush1.msra.mxu0 0.0
    %206 = vmatprep.subr.mxu0 0.0
    %207 = vmatpush1.msra.mxu0 0.0
    %208 = vmatprep.subr.mxu0 0.0
    %209 = vmatpush1.msra.mxu0 0.0
    %210 = vmatprep.subr.mxu0 0.0
    %211 = vmatpush1.msra.mxu0 0.0
    %212 = vmatprep.subr.mxu0 0.0
    %213 = vmatpush1.msra.mxu0 0.0
    %214 = vmatprep.subr.mxu0 0.0
    %215 = vmatpush1.msra.mxu0 0.0
    %216 = vmatprep.subr.mxu0 0.0
    %217 = vmatpush1.msra.mxu0 0.0
    %218 = vmatprep.subr.mxu0 0.0
    %219 = vmatpush1.msra.mxu0 0.0
    %220 = vmatprep.subr.mxu0 0.0
    %221 = vmatpush1.msra.mxu0 0.0
    %222 = vmatprep.subr.mxu0 0.0
    %223 = vmatpush1.msra.mxu0 0.0
    %224 = vmatprep.subr.mxu0 0.0
    %225 = vmatpush1.msra.mxu0 0.0
    %226 = vmatprep.subr.mxu0 0.0
    %227 = vmatpush1.msra.mxu0 0.0
    %228 = vmatprep.subr.mxu0 0.0
    %229 = vmatpush1.msra.mxu0 0.0
    %230 = vmatprep.subr.mxu0 0.0
    %231 = vmatpush1.msra.mxu0 0.0
    %232 = vmatprep.subr.mxu0 0.0
    %233 = vmatpush1.msra.mxu0 0.0
    %234 = vmatprep.subr.mxu0 0.0
    %235 = vmatpush1.msra.mxu0 0.0
    %236 = vmatprep.subr.mxu0 0.0
    %237 = vmatpush1.msra.mxu0 0.0
    %238 = vmatprep.subr.mxu0 0.0
    %239 = vmatpush1.msra.mxu0 0.0
    %240 = vmatprep.subr.mxu0 0.0
    %241 = vmatpush1.msra.mxu0 0.0
    %242 = vmatprep.mubr.f32.mxu0 0.0
    %243 = vmatmul.mubr.f32.gmra.mrb[0].mxu0 %v155
    %v244 = vpop.f32.mrb[0].mxu0
    %v245 = vadd.f32 %v151, %v244
    %v246 = vpop.f32.mrb[0].mxu0
    %247 = vmatprep.mubr.f32.mxu0 0.0
    %248 = vmatmul.mubr.f32.gmra.mrb[0].mxu0 %v158
    %v249 = vpop.f32.mrb[0].mxu0
    %v250 = vadd.f32 %v151, %v249
    %v251 = vpop.f32.mrb[0].mxu0
    %252 = vmatprep.mubr.f32.mxu0 0.0
    %253 = vmatmul.mubr.f32.gmra.mrb[0].mxu0 %v161
    %v254 = vpop.f32.mrb[0].mxu0
    %v255 = vadd.f32 %v151, %v254
    %v256 = vpop.f32.mrb[0].mxu0
    %257 = vmatprep.mubr.f32.mxu0 0.0
    %258 = vmatmul.mubr.f32.gmra.mrb[0].mxu0 %v164
    %v259 = vpop.f32.mrb[0].mxu0
    %v260 = vadd.f32 %v151, %v259
    %v261 = vpop.f32.mrb[0].mxu0
    %262 = vmatprep.mubr.f32.mxu0 0.0
    %263 = vmatmul.mubr.f32.gmra.mrb[0].mxu0 %v167
    %v264 = vpop.f32.mrb[0].mxu0
    %v265 = vadd.f32 %v151, %v264
    %v266 = vpop.f32.mrb[0].mxu0
    %267 = vmatprep.mubr.f32.mxu0 0.0
    %268 = vmatmul.mubr.f32.gmra.mrb[0].mxu0 %v170
    %v269 = vpop.f32.mrb[0].mxu0
    %v270 = vadd.f32 %v151, %v269
    %v271 = vpop.f32.mrb[0].mxu0
    %272 = vmatprep.mubr.f32.mxu0 0.0
    %273 = vmatmul.mubr.f32.gmra.mrb[0].mxu0 %v173
    %v274 = vpop.f32.mrb[0].mxu0
    %v275 = vadd.f32 %v151, %v274
    %v276 = vpop.f32.mrb[0].mxu0
    %277 = vmatprep.mubr.f32.mxu0 0.0
    %278 = vmatmul.mubr.f32.gmra.mrb[0].mxu0 %v176
    %v279 = vpop.f32.mrb[0].mxu0
    %v280 = vadd.f32 %v151, %v279
    %v281 = vpop.f32.mrb[0].mxu0
    %282 = vdwg.mxu0
    %283 = vst [vmem:[#allocation3] sm:$0xff] %v245
    %284 = vst [vmem:[#allocation3 + $0x8] sm:$0xff] %v250
    %285 = vst [vmem:[#allocation3 + $0x10] sm:$0xff] %v255
    %286 = vst [vmem:[#allocation3 + $0x18] sm:$0xff] %v260
    %287 = vst [vmem:[#allocation3 + $0x20] sm:$0xff] %v265
    %288 = vst [vmem:[#allocation3 + $0x28] sm:$0xff] %v270
    %289 = vst [vmem:[#allocation3 + $0x30] sm:$0xff] %v275
    %290 = vst [vmem:[#allocation3 + $0x38] sm:$0xff] %v280
    %v291 = vld [vmem:[#allocation3] sm:$0xff]
    %vm292 = vcmask 261120
    %v294 = vsel %vm292, 0.0, 0
    %296 = vmatprep.subr.mxu0 0.0
    %297 = vmatpush1.msra.mxu0 %v142
    %298 = vmatprep.subr.mxu0 0.0
    %299 = vmatpush1.msra.mxu0 %v143
    %300 = vmatprep.subr.mxu0 0.0
    %301 = vmatpush1.msra.mxu0 %v144
    %302 = vmatprep.subr.mxu0 0.0
    %303 = vmatpush1.msra.mxu0 %v145
    %304 = vmatprep.subr.mxu0 0.0
    %305 = vmatpush1.msra.mxu0 0.0
    %306 = vmatprep.subr.mxu0 0.0
    %307 = vmatpush1.msra.mxu0 0.0
    %308 = vmatprep.subr.mxu0 0.0
    %309 = vmatpush1.msra.mxu0 0.0
    %310 = vmatprep.subr.mxu0 0.0
    %311 = vmatpush1.msra.mxu0 0.0
    %312 = vmatprep.subr.mxu0 0.0
    %313 = vmatpush1.msra.mxu0 0.0
    %314 = vmatprep.subr.mxu0 0.0
    %315 = vmatpush1.msra.mxu0 0.0
    %316 = vmatprep.subr.mxu0 0.0
    %317 = vmatpush1.msra.mxu0 0.0
    %318 = vmatprep.subr.mxu0 0.0
    %319 = vmatpush1.msra.mxu0 0.0
    %320 = vmatprep.subr.mxu0 0.0
    %321 = vmatpush1.msra.mxu0 0.0
    %322 = vmatprep.subr.mxu0 0.0
    %323 = vmatpush1.msra.mxu0 0.0
    %324 = vmatprep.subr.mxu0 0.0
    %325 = vmatpush1.msra.mxu0 0.0
    %326 = vmatprep.subr.mxu0 0.0
    %327 = vmatpush1.msra.mxu0 0.0
    %328 = vmatprep.subr.mxu0 0.0
    %329 = vmatpush1.msra.mxu0 0.0
    %330 = vmatprep.subr.mxu0 0.0
    %331 = vmatpush1.msra.mxu0 0.0
    %332 = vmatprep.subr.mxu0 0.0
    %333 = vmatpush1.msra.mxu0 0.0
    %334 = vmatprep.subr.mxu0 0.0
    %335 = vmatpush1.msra.mxu0 0.0
    %336 = vmatprep.subr.mxu0 0.0
    %337 = vmatpush1.msra.mxu0 0.0
    %338 = vmatprep.subr.mxu0 0.0
    %339 = vmatpush1.msra.mxu0 0.0
    %340 = vmatprep.subr.mxu0 0.0
    %341 = vmatpush1.msra.mxu0 0.0
    %342 = vmatprep.subr.mxu0 0.0
    %343 = vmatpush1.msra.mxu0 0.0
    %344 = vmatprep.subr.mxu0 0.0
    %345 = vmatpush1.msra.mxu0 0.0
    %346 = vmatprep.subr.mxu0 0.0
    %347 = vmatpush1.msra.mxu0 0.0
    %348 = vmatprep.subr.mxu0 0.0
    %349 = vmatpush1.msra.mxu0 0.0
    %350 = vmatprep.subr.mxu0 0.0
    %351 = vmatpush1.msra.mxu0 0.0
    %352 = vmatprep.subr.mxu0 0.0
    %353 = vmatpush1.msra.mxu0 0.0
    %354 = vmatprep.subr.mxu0 0.0
    %355 = vmatpush1.msra.mxu0 0.0
    %356 = vmatprep.subr.mxu0 0.0
    %357 = vmatpush1.msra.mxu0 0.0
    %358 = vmatprep.subr.mxu0 0.0
    %359 = vmatpush1.msra.mxu0 0.0
    %360 = vmatprep.mubr.f32.mxu0 0.0
    %361 = vmatmul.mubr.f32.gmra.mrb[0].mxu0 %v294
    %v362 = vpop.f32.mrb[0].mxu0
    %v363 = vadd.f32 0.0, %v362
    %v364 = vpop.f32.mrb[0].mxu0
    %365 = vdwg.mxu0
    %v366 = vadd.f32 %v291, %v363
    %v367 = vxor.u32 %v366, 2147483648
    %v368 = vmul.f32 %v367, 1.442695
    %v369 = vpow.pop %v368
    %v370 = vadd.f32 %v369, 1.0
    %v371 = vrcp.pop %v370
    %v372 = vmul.f32 1.0, %v371
    %v373 = vtanh.pop %v366
    %v374 = vmul.f32 %v372, 0.0
    %376 = vrot.lane.b32.xlu0 %v373, 64
    %v377 = vpop.permute.xlu0 %376
    %v379 = vmul.f32 %v372, %v377
    %381 = vrot.lane.b32.xlu0 %v379, 32
    %v382 = vpop.permute.xlu0 %381
    %v384 = vadd.f32 %v374, %v382
    %v385 = vtanh.pop %v384
    %387 = vrot.lane.b32.xlu0 %v385, 64
    %v388 = vpop.permute.xlu0 %387
    %v390 = vmul.f32 %v372, %v388
    %392 = vrot.lane.b32.xlu0 %v390, 32
    %v393 = vpop.permute.xlu0 %392
    %395 = vst.msk [vmem:[#allocation2] sm:$0xff] %vm292, %v393
    %s396 = scalar_lea.vmem [#allocation3], 8
    %v397 = vld [vmem:[%s396] sm:$0xff]
    %v398 = vsel %vm292, %v393, 0
    %400 = vmatprep.subr.mxu0 0.0
    %401 = vmatpush1.msra.mxu0 %v142
    %402 = vmatprep.subr.mxu0 0.0
    %403 = vmatpush1.msra.mxu0 %v143
    %404 = vmatprep.subr.mxu0 0.0
    %405 = vmatpush1.msra.mxu0 %v144
    %406 = vmatprep.subr.mxu0 0.0
    %407 = vmatpush1.msra.mxu0 %v145
    %408 = vmatprep.subr.mxu0 0.0
    %409 = vmatpush1.msra.mxu0 0.0
    %410 = vmatprep.subr.mxu0 0.0
    %411 = vmatpush1.msra.mxu0 0.0
    %412 = vmatprep.subr.mxu0 0.0
    %413 = vmatpush1.msra.mxu0 0.0
    %414 = vmatprep.subr.mxu0 0.0
    %415 = vmatpush1.msra.mxu0 0.0
    %416 = vmatprep.subr.mxu0 0.0
    %417 = vmatpush1.msra.mxu0 0.0
    %418 = vmatprep.subr.mxu0 0.0
    %419 = vmatpush1.msra.mxu0 0.0
    %420 = vmatprep.subr.mxu0 0.0
    %421 = vmatpush1.msra.mxu0 0.0
    %422 = vmatprep.subr.mxu0 0.0
    %423 = vmatpush1.msra.mxu0 0.0
    %424 = vmatprep.subr.mxu0 0.0
    %425 = vmatpush1.msra.mxu0 0.0
    %426 = vmatprep.subr.mxu0 0.0
    %427 = vmatpush1.msra.mxu0 0.0
    %428 = vmatprep.subr.mxu0 0.0
    %429 = vmatpush1.msra.mxu0 0.0
    %430 = vmatprep.subr.mxu0 0.0
    %431 = vmatpush1.msra.mxu0 0.0
    %432 = vmatprep.subr.mxu0 0.0
    %433 = vmatpush1.msra.mxu0 0.0
    %434 = vmatprep.subr.mxu0 0.0
    %435 = vmatpush1.msra.mxu0 0.0
    %436 = vmatprep.subr.mxu0 0.0
    %437 = vmatpush1.msra.mxu0 0.0
    %438 = vmatprep.subr.mxu0 0.0
    %439 = vmatpush1.msra.mxu0 0.0
    %440 = vmatprep.subr.mxu0 0.0
    %441 = vmatpush1.msra.mxu0 0.0
    %442 = vmatprep.subr.mxu0 0.0
    %443 = vmatpush1.msra.mxu0 0.0
    %444 = vmatprep.subr.mxu0 0.0
    %445 = vmatpush1.msra.mxu0 0.0
    %446 = vmatprep.subr.mxu0 0.0
    %447 = vmatpush1.msra.mxu0 0.0
    %448 = vmatprep.subr.mxu0 0.0
    %449 = vmatpush1.msra.mxu0 0.0
    %450 = vmatprep.subr.mxu0 0.0
    %451 = vmatpush1.msra.mxu0 0.0
    %452 = vmatprep.subr.mxu0 0.0
    %453 = vmatpush1.msra.mxu0 0.0
    %454 = vmatprep.subr.mxu0 0.0
    %455 = vmatpush1.msra.mxu0 0.0
    %456 = vmatprep.subr.mxu0 0.0
    %457 = vmatpush1.msra.mxu0 0.0
    %458 = vmatprep.subr.mxu0 0.0
    %459 = vmatpush1.msra.mxu0 0.0
    %460 = vmatprep.subr.mxu0 0.0
    %461 = vmatpush1.msra.mxu0 0.0
    %462 = vmatprep.subr.mxu0 0.0
    %463 = vmatpush1.msra.mxu0 0.0
    %464 = vmatprep.mubr.f32.mxu0 0.0
    %465 = vmatmul.mubr.f32.gmra.mrb[0].mxu0 %v398
    %v466 = vpop.f32.mrb[0].mxu0
    %v467 = vadd.f32 0.0, %v466
    %v468 = vpop.f32.mrb[0].mxu0
    %469 = vdwg.mxu0
    %v470 = vadd.f32 %v397, %v467
    %v471 = vxor.u32 %v470, 2147483648
    %v472 = vmul.f32 %v471, 1.442695
    %v473 = vpow.pop %v472
    %v474 = vadd.f32 %v473, 1.0
    %v475 = vrcp.pop %v474
    %v476 = vmul.f32 1.0, %v475
    %v477 = vtanh.pop %v470
    %v478 = vmul.f32 %v476, %v384
    %480 = vrot.lane.b32.xlu0 %v477, 64
    %v481 = vpop.permute.xlu0 %480
    %v483 = vmul.f32 %v476, %v481
    %485 = vrot.lane.b32.xlu0 %v483, 32
    %v486 = vpop.permute.xlu0 %485
    %v488 = vadd.f32 %v478, %v486
    %v489 = vtanh.pop %v488
    %491 = vrot.lane.b32.xlu0 %v489, 64
    %v492 = vpop.permute.xlu0 %491
    %v494 = vmul.f32 %v476, %v492
    %496 = vrot.lane.b32.xlu0 %v494, 32
    %v497 = vpop.permute.xlu0 %496
    %s499 = scalar_lea.vmem [#allocation2], 8
    %500 = vst.msk [vmem:[%s499] sm:$0xff] %vm292, %v497
    %s501 = scalar_lea.vmem [#allocation3], 16
    %v502 = vld [vmem:[%s501] sm:$0xff]
    %v503 = vsel %vm292, %v497, 0
    %505 = vmatprep.subr.mxu0 0.0
    %506 = vmatpush1.msra.mxu0 %v142
    %507 = vmatprep.subr.mxu0 0.0
    %508 = vmatpush1.msra.mxu0 %v143
    %509 = vmatprep.subr.mxu0 0.0
    %510 = vmatpush1.msra.mxu0 %v144
    %511 = vmatprep.subr.mxu0 0.0
    %512 = vmatpush1.msra.mxu0 %v145
    %513 = vmatprep.subr.mxu0 0.0
    %514 = vmatpush1.msra.mxu0 0.0
    %515 = vmatprep.subr.mxu0 0.0
    %516 = vmatpush1.msra.mxu0 0.0
    %517 = vmatprep.subr.mxu0 0.0
    %518 = vmatpush1.msra.mxu0 0.0
    %519 = vmatprep.subr.mxu0 0.0
    %520 = vmatpush1.msra.mxu0 0.0
    %521 = vmatprep.subr.mxu0 0.0
    %522 = vmatpush1.msra.mxu0 0.0
    %523 = vmatprep.subr.mxu0 0.0
    %524 = vmatpush1.msra.mxu0 0.0
    %525 = vmatprep.subr.mxu0 0.0
    %526 = vmatpush1.msra.mxu0 0.0
    %527 = vmatprep.subr.mxu0 0.0
    %528 = vmatpush1.msra.mxu0 0.0
    %529 = vmatprep.subr.mxu0 0.0
    %530 = vmatpush1.msra.mxu0 0.0
    %531 = vmatprep.subr.mxu0 0.0
    %532 = vmatpush1.msra.mxu0 0.0
    %533 = vmatprep.subr.mxu0 0.0
    %534 = vmatpush1.msra.mxu0 0.0
    %535 = vmatprep.subr.mxu0 0.0
    %536 = vmatpush1.msra.mxu0 0.0
    %537 = vmatprep.subr.mxu0 0.0
    %538 = vmatpush1.msra.mxu0 0.0
    %539 = vmatprep.subr.mxu0 0.0
    %540 = vmatpush1.msra.mxu0 0.0
    %541 = vmatprep.subr.mxu0 0.0
    %542 = vmatpush1.msra.mxu0 0.0
    %543 = vmatprep.subr.mxu0 0.0
    %544 = vmatpush1.msra.mxu0 0.0
    %545 = vmatprep.subr.mxu0 0.0
    %546 = vmatpush1.msra.mxu0 0.0
    %547 = vmatprep.subr.mxu0 0.0
    %548 = vmatpush1.msra.mxu0 0.0
    %549 = vmatprep.subr.mxu0 0.0
    %550 = vmatpush1.msra.mxu0 0.0
    %551 = vmatprep.subr.mxu0 0.0
    %552 = vmatpush1.msra.mxu0 0.0
    %553 = vmatprep.subr.mxu0 0.0
    %554 = vmatpush1.msra.mxu0 0.0
    %555 = vmatprep.subr.mxu0 0.0
    %556 = vmatpush1.msra.mxu0 0.0
    %557 = vmatprep.subr.mxu0 0.0
    %558 = vmatpush1.msra.mxu0 0.0
    %559 = vmatprep.subr.mxu0 0.0
    %560 = vmatpush1.msra.mxu0 0.0
    %561 = vmatprep.subr.mxu0 0.0
    %562 = vmatpush1.msra.mxu0 0.0
    %563 = vmatprep.subr.mxu0 0.0
    %564 = vmatpush1.msra.mxu0 0.0
    %565 = vmatprep.subr.mxu0 0.0
    %566 = vmatpush1.msra.mxu0 0.0
    %567 = vmatprep.subr.mxu0 0.0
    %568 = vmatpush1.msra.mxu0 0.0
    %569 = vmatprep.mubr.f32.mxu0 0.0
    %570 = vmatmul.mubr.f32.gmra.mrb[0].mxu0 %v503
    %v571 = vpop.f32.mrb[0].mxu0
    %v572 = vadd.f32 0.0, %v571
    %v573 = vpop.f32.mrb[0].mxu0
    %574 = vdwg.mxu0
    %v575 = vadd.f32 %v502, %v572
    %v576 = vxor.u32 %v575, 2147483648
    %v577 = vmul.f32 %v576, 1.442695
    %v578 = vpow.pop %v577
    %v579 = vadd.f32 %v578, 1.0
    %v580 = vrcp.pop %v579
    %v581 = vmul.f32 1.0, %v580
    %v582 = vtanh.pop %v575
    %v583 = vmul.f32 %v581, %v488
    %585 = vrot.lane.b32.xlu0 %v582, 64
    %v586 = vpop.permute.xlu0 %585
    %v588 = vmul.f32 %v581, %v586
    %590 = vrot.lane.b32.xlu0 %v588, 32
    %v591 = vpop.permute.xlu0 %590
    %v593 = vadd.f32 %v583, %v591
    %v594 = vtanh.pop %v593
    %596 = vrot.lane.b32.xlu0 %v594, 64
    %v597 = vpop.permute.xlu0 %596
    %v599 = vmul.f32 %v581, %v597
    %601 = vrot.lane.b32.xlu0 %v599, 32
    %v602 = vpop.permute.xlu0 %601
    %s604 = scalar_lea.vmem [#allocation2], 16
    %605 = vst.msk [vmem:[%s604] sm:$0xff] %vm292, %v602
    %s606 = scalar_lea.vmem [#allocation3], 24
    %v607 = vld [vmem:[%s606] sm:$0xff]
    %v608 = vsel %vm292, %v602, 0
    %610 = vmatprep.subr.mxu0 0.0
    %611 = vmatpush1.msra.mxu0 %v142
    %612 = vmatprep.subr.mxu0 0.0
    %613 = vmatpush1.msra.mxu0 %v143
    %614 = vmatprep.subr.mxu0 0.0
    %615 = vmatpush1.msra.mxu0 %v144
    %616 = vmatprep.subr.mxu0 0.0
    %617 = vmatpush1.msra.mxu0 %v145
    %618 = vmatprep.subr.mxu0 0.0
    %619 = vmatpush1.msra.mxu0 0.0
    %620 = vmatprep.subr.mxu0 0.0
    %621 = vmatpush1.msra.mxu0 0.0
    %622 = vmatprep.subr.mxu0 0.0
    %623 = vmatpush1.msra.mxu0 0.0
    %624 = vmatprep.subr.mxu0 0.0
    %625 = vmatpush1.msra.mxu0 0.0
    %626 = vmatprep.subr.mxu0 0.0
    %627 = vmatpush1.msra.mxu0 0.0
    %628 = vmatprep.subr.mxu0 0.0
    %629 = vmatpush1.msra.mxu0 0.0
    %630 = vmatprep.subr.mxu0 0.0
    %631 = vmatpush1.msra.mxu0 0.0
    %632 = vmatprep.subr.mxu0 0.0
    %633 = vmatpush1.msra.mxu0 0.0
    %634 = vmatprep.subr.mxu0 0.0
    %635 = vmatpush1.msra.mxu0 0.0
    %636 = vmatprep.subr.mxu0 0.0
    %637 = vmatpush1.msra.mxu0 0.0
    %638 = vmatprep.subr.mxu0 0.0
    %639 = vmatpush1.msra.mxu0 0.0
    %640 = vmatprep.subr.mxu0 0.0
    %641 = vmatpush1.msra.mxu0 0.0
    %642 = vmatprep.subr.mxu0 0.0
    %643 = vmatpush1.msra.mxu0 0.0
    %644 = vmatprep.subr.mxu0 0.0
    %645 = vmatpush1.msra.mxu0 0.0
    %646 = vmatprep.subr.mxu0 0.0
    %647 = vmatpush1.msra.mxu0 0.0
    %648 = vmatprep.subr.mxu0 0.0
    %649 = vmatpush1.msra.mxu0 0.0
    %650 = vmatprep.subr.mxu0 0.0
    %651 = vmatpush1.msra.mxu0 0.0
    %652 = vmatprep.subr.mxu0 0.0
    %653 = vmatpush1.msra.mxu0 0.0
    %654 = vmatprep.subr.mxu0 0.0
    %655 = vmatpush1.msra.mxu0 0.0
    %656 = vmatprep.subr.mxu0 0.0
    %657 = vmatpush1.msra.mxu0 0.0
    %658 = vmatprep.subr.mxu0 0.0
    %659 = vmatpush1.msra.mxu0 0.0
    %660 = vmatprep.subr.mxu0 0.0
    %661 = vmatpush1.msra.mxu0 0.0
    %662 = vmatprep.subr.mxu0 0.0
    %663 = vmatpush1.msra.mxu0 0.0
    %664 = vmatprep.subr.mxu0 0.0
    %665 = vmatpush1.msra.mxu0 0.0
    %666 = vmatprep.subr.mxu0 0.0
    %667 = vmatpush1.msra.mxu0 0.0
    %668 = vmatprep.subr.mxu0 0.0
    %669 = vmatpush1.msra.mxu0 0.0
    %670 = vmatprep.subr.mxu0 0.0
    %671 = vmatpush1.msra.mxu0 0.0
    %672 = vmatprep.subr.mxu0 0.0
    %673 = vmatpush1.msra.mxu0 0.0
    %674 = vmatprep.mubr.f32.mxu0 0.0
    %675 = vmatmul.mubr.f32.gmra.mrb[0].mxu0 %v608
    %v676 = vpop.f32.mrb[0].mxu0
    %v677 = vadd.f32 0.0, %v676
    %v678 = vpop.f32.mrb[0].mxu0
    %679 = vdwg.mxu0
    %v680 = vadd.f32 %v607, %v677
    %v681 = vxor.u32 %v680, 2147483648
    %v682 = vmul.f32 %v681, 1.442695
    %v683 = vpow.pop %v682
    %v684 = vadd.f32 %v683, 1.0
    %v685 = vrcp.pop %v684
    %v686 = vmul.f32 1.0, %v685
    %v687 = vtanh.pop %v680
    %v688 = vmul.f32 %v686, %v593
    %690 = vrot.lane.b32.xlu0 %v687, 64
    %v691 = vpop.permute.xlu0 %690
    %v693 = vmul.f32 %v686, %v691
    %695 = vrot.lane.b32.xlu0 %v693, 32
    %v696 = vpop.permute.xlu0 %695
    %v698 = vadd.f32 %v688, %v696
    %v699 = vtanh.pop %v698
    %701 = vrot.lane.b32.xlu0 %v699, 64
    %v702 = vpop.permute.xlu0 %701
    %v704 = vmul.f32 %v686, %v702
    %706 = vrot.lane.b32.xlu0 %v704, 32
    %v707 = vpop.permute.xlu0 %706
    %s709 = scalar_lea.vmem [#allocation2], 24
    %710 = vst.msk [vmem:[%s709] sm:$0xff] %vm292, %v707
    %s711 = scalar_lea.vmem [#allocation3], 32
    %v712 = vld [vmem:[%s711] sm:$0xff]
    %v713 = vsel %vm292, %v707, 0
    %715 = vmatprep.subr.mxu0 0.0
    %716 = vmatpush1.msra.mxu0 %v142
    %717 = vmatprep.subr.mxu0 0.0
    %718 = vmatpush1.msra.mxu0 %v143
    %719 = vmatprep.subr.mxu0 0.0
    %720 = vmatpush1.msra.mxu0 %v144
    %721 = vmatprep.subr.mxu0 0.0
    %722 = vmatpush1.msra.mxu0 %v145
    %723 = vmatprep.subr.mxu0 0.0
    %724 = vmatpush1.msra.mxu0 0.0
    %725 = vmatprep.subr.mxu0 0.0
    %726 = vmatpush1.msra.mxu0 0.0
    %727 = vmatprep.subr.mxu0 0.0
    %728 = vmatpush1.msra.mxu0 0.0
    %729 = vmatprep.subr.mxu0 0.0
    %730 = vmatpush1.msra.mxu0 0.0
    %731 = vmatprep.subr.mxu0 0.0
    %732 = vmatpush1.msra.mxu0 0.0
    %733 = vmatprep.subr.mxu0 0.0
    %734 = vmatpush1.msra.mxu0 0.0
    %735 = vmatprep.subr.mxu0 0.0
    %736 = vmatpush1.msra.mxu0 0.0
    %737 = vmatprep.subr.mxu0 0.0
    %738 = vmatpush1.msra.mxu0 0.0
    %739 = vmatprep.subr.mxu0 0.0
    %740 = vmatpush1.msra.mxu0 0.0
    %741 = vmatprep.subr.mxu0 0.0
    %742 = vmatpush1.msra.mxu0 0.0
    %743 = vmatprep.subr.mxu0 0.0
    %744 = vmatpush1.msra.mxu0 0.0
    %745 = vmatprep.subr.mxu0 0.0
    %746 = vmatpush1.msra.mxu0 0.0
    %747 = vmatprep.subr.mxu0 0.0
    %748 = vmatpush1.msra.mxu0 0.0
    %749 = vmatprep.subr.mxu0 0.0
    %750 = vmatpush1.msra.mxu0 0.0
    %751 = vmatprep.subr.mxu0 0.0
    %752 = vmatpush1.msra.mxu0 0.0
    %753 = vmatprep.subr.mxu0 0.0
    %754 = vmatpush1.msra.mxu0 0.0
    %755 = vmatprep.subr.mxu0 0.0
    %756 = vmatpush1.msra.mxu0 0.0
    %757 = vmatprep.subr.mxu0 0.0
    %758 = vmatpush1.msra.mxu0 0.0
    %759 = vmatprep.subr.mxu0 0.0
    %760 = vmatpush1.msra.mxu0 0.0
    %761 = vmatprep.subr.mxu0 0.0
    %762 = vmatpush1.msra.mxu0 0.0
    %763 = vmatprep.subr.mxu0 0.0
    %764 = vmatpush1.msra.mxu0 0.0
    %765 = vmatprep.subr.mxu0 0.0
    %766 = vmatpush1.msra.mxu0 0.0
    %767 = vmatprep.subr.mxu0 0.0
    %768 = vmatpush1.msra.mxu0 0.0
    %769 = vmatprep.subr.mxu0 0.0
    %770 = vmatpush1.msra.mxu0 0.0
    %771 = vmatprep.subr.mxu0 0.0
    %772 = vmatpush1.msra.mxu0 0.0
    %773 = vmatprep.subr.mxu0 0.0
    %774 = vmatpush1.msra.mxu0 0.0
    %775 = vmatprep.subr.mxu0 0.0
    %776 = vmatpush1.msra.mxu0 0.0
    %777 = vmatprep.subr.mxu0 0.0
    %778 = vmatpush1.msra.mxu0 0.0
    %779 = vmatprep.mubr.f32.mxu0 0.0
    %780 = vmatmul.mubr.f32.gmra.mrb[0].mxu0 %v713
    %v781 = vpop.f32.mrb[0].mxu0
    %v782 = vadd.f32 0.0, %v781
    %v783 = vpop.f32.mrb[0].mxu0
    %784 = vdwg.mxu0
    %v785 = vadd.f32 %v712, %v782
    %v786 = vxor.u32 %v785, 2147483648
    %v787 = vmul.f32 %v786, 1.442695
    %v788 = vpow.pop %v787
    %v789 = vadd.f32 %v788, 1.0
    %v790 = vrcp.pop %v789
    %v791 = vmul.f32 1.0, %v790
    %v792 = vtanh.pop %v785
    %v793 = vmul.f32 %v791, %v698
    %795 = vrot.lane.b32.xlu0 %v792, 64
    %v796 = vpop.permute.xlu0 %795
    %v798 = vmul.f32 %v791, %v796
    %800 = vrot.lane.b32.xlu0 %v798, 32
    %v801 = vpop.permute.xlu0 %800
    %v803 = vadd.f32 %v793, %v801
    %v804 = vtanh.pop %v803
    %806 = vrot.lane.b32.xlu0 %v804, 64
    %v807 = vpop.permute.xlu0 %806
    %v809 = vmul.f32 %v791, %v807
    %811 = vrot.lane.b32.xlu0 %v809, 32
    %v812 = vpop.permute.xlu0 %811
    %s814 = scalar_lea.vmem [#allocation2], 32
    %815 = vst.msk [vmem:[%s814] sm:$0xff] %vm292, %v812
    %s816 = scalar_lea.vmem [#allocation3], 40
    %v817 = vld [vmem:[%s816] sm:$0xff]
    %v818 = vsel %vm292, %v812, 0
    %820 = vmatprep.subr.mxu0 0.0
    %821 = vmatpush1.msra.mxu0 %v142
    %822 = vmatprep.subr.mxu0 0.0
    %823 = vmatpush1.msra.mxu0 %v143
    %824 = vmatprep.subr.mxu0 0.0
    %825 = vmatpush1.msra.mxu0 %v144
    %826 = vmatprep.subr.mxu0 0.0
    %827 = vmatpush1.msra.mxu0 %v145
    %828 = vmatprep.subr.mxu0 0.0
    %829 = vmatpush1.msra.mxu0 0.0
    %830 = vmatprep.subr.mxu0 0.0
    %831 = vmatpush1.msra.mxu0 0.0
    %832 = vmatprep.subr.mxu0 0.0
    %833 = vmatpush1.msra.mxu0 0.0
    %834 = vmatprep.subr.mxu0 0.0
    %835 = vmatpush1.msra.mxu0 0.0
    %836 = vmatprep.subr.mxu0 0.0
    %837 = vmatpush1.msra.mxu0 0.0
    %838 = vmatprep.subr.mxu0 0.0
    %839 = vmatpush1.msra.mxu0 0.0
    %840 = vmatprep.subr.mxu0 0.0
    %841 = vmatpush1.msra.mxu0 0.0
    %842 = vmatprep.subr.mxu0 0.0
    %843 = vmatpush1.msra.mxu0 0.0
    %844 = vmatprep.subr.mxu0 0.0
    %845 = vmatpush1.msra.mxu0 0.0
    %846 = vmatprep.subr.mxu0 0.0
    %847 = vmatpush1.msra.mxu0 0.0
    %848 = vmatprep.subr.mxu0 0.0
    %849 = vmatpush1.msra.mxu0 0.0
    %850 = vmatprep.subr.mxu0 0.0
    %851 = vmatpush1.msra.mxu0 0.0
    %852 = vmatprep.subr.mxu0 0.0
    %853 = vmatpush1.msra.mxu0 0.0
    %854 = vmatprep.subr.mxu0 0.0
    %855 = vmatpush1.msra.mxu0 0.0
    %856 = vmatprep.subr.mxu0 0.0
    %857 = vmatpush1.msra.mxu0 0.0
    %858 = vmatprep.subr.mxu0 0.0
    %859 = vmatpush1.msra.mxu0 0.0
    %860 = vmatprep.subr.mxu0 0.0
    %861 = vmatpush1.msra.mxu0 0.0
    %862 = vmatprep.subr.mxu0 0.0
    %863 = vmatpush1.msra.mxu0 0.0
    %864 = vmatprep.subr.mxu0 0.0
    %865 = vmatpush1.msra.mxu0 0.0
    %866 = vmatprep.subr.mxu0 0.0
    %867 = vmatpush1.msra.mxu0 0.0
    %868 = vmatprep.subr.mxu0 0.0
    %869 = vmatpush1.msra.mxu0 0.0
    %870 = vmatprep.subr.mxu0 0.0
    %871 = vmatpush1.msra.mxu0 0.0
    %872 = vmatprep.subr.mxu0 0.0
    %873 = vmatpush1.msra.mxu0 0.0
    %874 = vmatprep.subr.mxu0 0.0
    %875 = vmatpush1.msra.mxu0 0.0
    %876 = vmatprep.subr.mxu0 0.0
    %877 = vmatpush1.msra.mxu0 0.0
    %878 = vmatprep.subr.mxu0 0.0
    %879 = vmatpush1.msra.mxu0 0.0
    %880 = vmatprep.subr.mxu0 0.0
    %881 = vmatpush1.msra.mxu0 0.0
    %882 = vmatprep.subr.mxu0 0.0
    %883 = vmatpush1.msra.mxu0 0.0
    %884 = vmatprep.mubr.f32.mxu0 0.0
    %885 = vmatmul.mubr.f32.gmra.mrb[0].mxu0 %v818
    %v886 = vpop.f32.mrb[0].mxu0
    %v887 = vadd.f32 0.0, %v886
    %v888 = vpop.f32.mrb[0].mxu0
    %889 = vdwg.mxu0
    %v890 = vadd.f32 %v817, %v887
    %v891 = vxor.u32 %v890, 2147483648
    %v892 = vmul.f32 %v891, 1.442695
    %v893 = vpow.pop %v892
    %v894 = vadd.f32 %v893, 1.0
    %v895 = vrcp.pop %v894
    %v896 = vmul.f32 1.0, %v895
    %v897 = vtanh.pop %v890
    %v898 = vmul.f32 %v896, %v803
    %900 = vrot.lane.b32.xlu0 %v897, 64
    %v901 = vpop.permute.xlu0 %900
    %v903 = vmul.f32 %v896, %v901
    %905 = vrot.lane.b32.xlu0 %v903, 32
    %v906 = vpop.permute.xlu0 %905
    %v908 = vadd.f32 %v898, %v906
    %v909 = vtanh.pop %v908
    %911 = vrot.lane.b32.xlu0 %v909, 64
    %v912 = vpop.permute.xlu0 %911
    %v914 = vmul.f32 %v896, %v912
    %916 = vrot.lane.b32.xlu0 %v914, 32
    %v917 = vpop.permute.xlu0 %916
    %s919 = scalar_lea.vmem [#allocation2], 40
    %920 = vst.msk [vmem:[%s919] sm:$0xff] %vm292, %v917
    %s921 = scalar_lea.vmem [#allocation3], 48
    %v922 = vld [vmem:[%s921] sm:$0xff]
    %v923 = vsel %vm292, %v917, 0
    %925 = vmatprep.subr.mxu0 0.0
    %926 = vmatpush1.msra.mxu0 %v142
    %927 = vmatprep.subr.mxu0 0.0
    %928 = vmatpush1.msra.mxu0 %v143
    %929 = vmatprep.subr.mxu0 0.0
    %930 = vmatpush1.msra.mxu0 %v144
    %931 = vmatprep.subr.mxu0 0.0
    %932 = vmatpush1.msra.mxu0 %v145
    %933 = vmatprep.subr.mxu0 0.0
    %934 = vmatpush1.msra.mxu0 0.0
    %935 = vmatprep.subr.mxu0 0.0
    %936 = vmatpush1.msra.mxu0 0.0
    %937 = vmatprep.subr.mxu0 0.0
    %938 = vmatpush1.msra.mxu0 0.0
    %939 = vmatprep.subr.mxu0 0.0
    %940 = vmatpush1.msra.mxu0 0.0
    %941 = vmatprep.subr.mxu0 0.0
    %942 = vmatpush1.msra.mxu0 0.0
    %943 = vmatprep.subr.mxu0 0.0
    %944 = vmatpush1.msra.mxu0 0.0
    %945 = vmatprep.subr.mxu0 0.0
    %946 = vmatpush1.msra.mxu0 0.0
    %947 = vmatprep.subr.mxu0 0.0
    %948 = vmatpush1.msra.mxu0 0.0
    %949 = vmatprep.subr.mxu0 0.0
    %950 = vmatpush1.msra.mxu0 0.0
    %951 = vmatprep.subr.mxu0 0.0
    %952 = vmatpush1.msra.mxu0 0.0
    %953 = vmatprep.subr.mxu0 0.0
    %954 = vmatpush1.msra.mxu0 0.0
    %955 = vmatprep.subr.mxu0 0.0
    %956 = vmatpush1.msra.mxu0 0.0
    %957 = vmatprep.subr.mxu0 0.0
    %958 = vmatpush1.msra.mxu0 0.0
    %959 = vmatprep.subr.mxu0 0.0
    %960 = vmatpush1.msra.mxu0 0.0
    %961 = vmatprep.subr.mxu0 0.0
    %962 = vmatpush1.msra.mxu0 0.0
    %963 = vmatprep.subr.mxu0 0.0
    %964 = vmatpush1.msra.mxu0 0.0
    %965 = vmatprep.subr.mxu0 0.0
    %966 = vmatpush1.msra.mxu0 0.0
    %967 = vmatprep.subr.mxu0 0.0
    %968 = vmatpush1.msra.mxu0 0.0
    %969 = vmatprep.subr.mxu0 0.0
    %970 = vmatpush1.msra.mxu0 0.0
    %971 = vmatprep.subr.mxu0 0.0
    %972 = vmatpush1.msra.mxu0 0.0
    %973 = vmatprep.subr.mxu0 0.0
    %974 = vmatpush1.msra.mxu0 0.0
    %975 = vmatprep.subr.mxu0 0.0
    %976 = vmatpush1.msra.mxu0 0.0
    %977 = vmatprep.subr.mxu0 0.0
    %978 = vmatpush1.msra.mxu0 0.0
    %979 = vmatprep.subr.mxu0 0.0
    %980 = vmatpush1.msra.mxu0 0.0
    %981 = vmatprep.subr.mxu0 0.0
    %982 = vmatpush1.msra.mxu0 0.0
    %983 = vmatprep.subr.mxu0 0.0
    %984 = vmatpush1.msra.mxu0 0.0
    %985 = vmatprep.subr.mxu0 0.0
    %986 = vmatpush1.msra.mxu0 0.0
    %987 = vmatprep.subr.mxu0 0.0
    %988 = vmatpush1.msra.mxu0 0.0
    %989 = vmatprep.mubr.f32.mxu0 0.0
    %990 = vmatmul.mubr.f32.gmra.mrb[0].mxu0 %v923
    %v991 = vpop.f32.mrb[0].mxu0
    %v992 = vadd.f32 0.0, %v991
    %v993 = vpop.f32.mrb[0].mxu0
    %994 = vdwg.mxu0
    %v995 = vadd.f32 %v922, %v992
    %v996 = vxor.u32 %v995, 2147483648
    %v997 = vmul.f32 %v996, 1.442695
    %v998 = vpow.pop %v997
    %v999 = vadd.f32 %v998, 1.0
    %v1000 = vrcp.pop %v999
    %v1001 = vmul.f32 1.0, %v1000
    %v1002 = vtanh.pop %v995
    %v1003 = vmul.f32 %v1001, %v908
    %1005 = vrot.lane.b32.xlu0 %v1002, 64
    %v1006 = vpop.permute.xlu0 %1005
    %v1008 = vmul.f32 %v1001, %v1006
    %1010 = vrot.lane.b32.xlu0 %v1008, 32
    %v1011 = vpop.permute.xlu0 %1010
    %v1013 = vadd.f32 %v1003, %v1011
    %v1014 = vtanh.pop %v1013
    %1016 = vrot.lane.b32.xlu0 %v1014, 64
    %v1017 = vpop.permute.xlu0 %1016
    %v1019 = vmul.f32 %v1001, %v1017
    %1021 = vrot.lane.b32.xlu0 %v1019, 32
    %v1022 = vpop.permute.xlu0 %1021
    %s1024 = scalar_lea.vmem [#allocation2], 48
    %1025 = vst.msk [vmem:[%s1024] sm:$0xff] %vm292, %v1022
    %s1026 = scalar_lea.vmem [#allocation3], 56
    %v1027 = vld [vmem:[%s1026] sm:$0xff]
    %v1028 = vsel %vm292, %v1022, 0
    %1030 = vmatprep.subr.mxu0 0.0
    %1031 = vmatpush1.msra.mxu0 %v142
    %1032 = vmatprep.subr.mxu0 0.0
    %1033 = vmatpush1.msra.mxu0 %v143
    %1034 = vmatprep.subr.mxu0 0.0
    %1035 = vmatpush1.msra.mxu0 %v144
    %1036 = vmatprep.subr.mxu0 0.0
    %1037 = vmatpush1.msra.mxu0 %v145
    %1038 = vmatprep.subr.mxu0 0.0
    %1039 = vmatpush1.msra.mxu0 0.0
    %1040 = vmatprep.subr.mxu0 0.0
    %1041 = vmatpush1.msra.mxu0 0.0
    %1042 = vmatprep.subr.mxu0 0.0
    %1043 = vmatpush1.msra.mxu0 0.0
    %1044 = vmatprep.subr.mxu0 0.0
    %1045 = vmatpush1.msra.mxu0 0.0
    %1046 = vmatprep.subr.mxu0 0.0
    %1047 = vmatpush1.msra.mxu0 0.0
    %1048 = vmatprep.subr.mxu0 0.0
    %1049 = vmatpush1.msra.mxu0 0.0
    %1050 = vmatprep.subr.mxu0 0.0
    %1051 = vmatpush1.msra.mxu0 0.0
    %1052 = vmatprep.subr.mxu0 0.0
    %1053 = vmatpush1.msra.mxu0 0.0
    %1054 = vmatprep.subr.mxu0 0.0
    %1055 = vmatpush1.msra.mxu0 0.0
    %1056 = vmatprep.subr.mxu0 0.0
    %1057 = vmatpush1.msra.mxu0 0.0
    %1058 = vmatprep.subr.mxu0 0.0
    %1059 = vmatpush1.msra.mxu0 0.0
    %1060 = vmatprep.subr.mxu0 0.0
    %1061 = vmatpush1.msra.mxu0 0.0
    %1062 = vmatprep.subr.mxu0 0.0
    %1063 = vmatpush1.msra.mxu0 0.0
    %1064 = vmatprep.subr.mxu0 0.0
    %1065 = vmatpush1.msra.mxu0 0.0
    %1066 = vmatprep.subr.mxu0 0.0
    %1067 = vmatpush1.msra.mxu0 0.0
    %1068 = vmatprep.subr.mxu0 0.0
    %1069 = vmatpush1.msra.mxu0 0.0
    %1070 = vmatprep.subr.mxu0 0.0
    %1071 = vmatpush1.msra.mxu0 0.0
    %1072 = vmatprep.subr.mxu0 0.0
    %1073 = vmatpush1.msra.mxu0 0.0
    %1074 = vmatprep.subr.mxu0 0.0
    %1075 = vmatpush1.msra.mxu0 0.0
    %1076 = vmatprep.subr.mxu0 0.0
    %1077 = vmatpush1.msra.mxu0 0.0
    %1078 = vmatprep.subr.mxu0 0.0
    %1079 = vmatpush1.msra.mxu0 0.0
    %1080 = vmatprep.subr.mxu0 0.0
    %1081 = vmatpush1.msra.mxu0 0.0
    %1082 = vmatprep.subr.mxu0 0.0
    %1083 = vmatpush1.msra.mxu0 0.0
    %1084 = vmatprep.subr.mxu0 0.0
    %1085 = vmatpush1.msra.mxu0 0.0
    %1086 = vmatprep.subr.mxu0 0.0
    %1087 = vmatpush1.msra.mxu0 0.0
    %1088 = vmatprep.subr.mxu0 0.0
    %1089 = vmatpush1.msra.mxu0 0.0
    %1090 = vmatprep.subr.mxu0 0.0
    %1091 = vmatpush1.msra.mxu0 0.0
    %1092 = vmatprep.subr.mxu0 0.0
    %1093 = vmatpush1.msra.mxu0 0.0
    %1094 = vmatprep.mubr.f32.mxu0 0.0
    %1095 = vmatmul.mubr.f32.gmra.mrb[0].mxu0 %v1028
    %v1096 = vpop.f32.mrb[0].mxu0
    %v1097 = vadd.f32 0.0, %v1096
    %v1098 = vpop.f32.mrb[0].mxu0
    %1099 = vdwg.mxu0
    %v1100 = vadd.f32 %v1027, %v1097
    %v1101 = vxor.u32 %v1100, 2147483648
    %v1102 = vmul.f32 %v1101, 1.442695
    %v1103 = vpow.pop %v1102
    %v1104 = vadd.f32 %v1103, 1.0
    %v1105 = vrcp.pop %v1104
    %v1106 = vmul.f32 1.0, %v1105
    %v1107 = vtanh.pop %v1100
    %v1108 = vmul.f32 %v1106, %v1013
    %1110 = vrot.lane.b32.xlu0 %v1107, 64
    %v1111 = vpop.permute.xlu0 %1110
    %v1113 = vmul.f32 %v1106, %v1111
    %1115 = vrot.lane.b32.xlu0 %v1113, 32
    %v1116 = vpop.permute.xlu0 %1115
    %v1118 = vadd.f32 %v1108, %v1116
    %v1119 = vtanh.pop %v1118
    %1121 = vrot.lane.b32.xlu0 %v1119, 64
    %v1122 = vpop.permute.xlu0 %1121
    %v1124 = vmul.f32 %v1106, %v1122
    %1126 = vrot.lane.b32.xlu0 %v1124, 32
    %v1127 = vpop.permute.xlu0 %1126
    %s1129 = scalar_lea.vmem [#allocation2], 56
    %1130 = vst.msk [vmem:[%s1129] sm:$0xff] %vm292, %v1127
    %v1131 = vld [vmem:[#allocation2] sm:$0xff]
    %v1132 = vld [vmem:[#allocation2 + $0x8] sm:$0xff]
    %v1133 = vld [vmem:[#allocation2 + $0x10] sm:$0xff]
    %v1134 = vld [vmem:[#allocation2 + $0x18] sm:$0xff]
    %v1135 = vld [vmem:[#allocation2 + $0x20] sm:$0xff]
    %v1136 = vld [vmem:[#allocation2 + $0x28] sm:$0xff]
    %v1137 = vld [vmem:[#allocation2 + $0x30] sm:$0xff]
    %v1138 = vld [vmem:[#allocation2 + $0x38] sm:$0xff]
    %v1139 = vld [vmem:[#allocation10] sm:$0xff]
    %v1140 = vld [vmem:[#allocation10 + $0x8] sm:$0xff]
    %v1141 = vld [vmem:[#allocation10 + $0x10] sm:$0xff]
    %v1142 = vld [vmem:[#allocation10 + $0x18] sm:$0xff]
    %v1143 = vld [vmem:[#allocation12] sm:$0xff]
    %v1144 = vld [vmem:[#allocation12 + $0x8] sm:$0xff]
    %v1145 = vld [vmem:[#allocation12 + $0x10] sm:$0xff]
    %v1146 = vld [vmem:[#allocation12 + $0x18] sm:$0xff]
    %v1147 = vld [vmem:[%s6] sm:$0x1]
    %v1149 = vlaneseq
    %v1150 = vshrl.u32 %v1149, 7
    %v1151 = vsub.s32 0, %v1150
    %v1152 = vrot.slane %v1147, %v1151
    %v1155 = vsel %vm292, %v1131, 0
    %v1158 = vsel %vm292, %v1132, 0
    %v1161 = vsel %vm292, %v1133, 0
    %v1164 = vsel %vm292, %v1134, 0
    %v1167 = vsel %vm292, %v1135, 0
    %v1170 = vsel %vm292, %v1136, 0
    %v1173 = vsel %vm292, %v1137, 0
    %v1176 = vsel %vm292, %v1138, 0
    %1178 = vmatprep.subr.mxu0 0.0
    %1179 = vmatpush1.msra.mxu0 %v1139
    %1180 = vmatprep.subr.mxu0 0.0
    %1181 = vmatpush1.msra.mxu0 %v1140
    %1182 = vmatprep.subr.mxu0 0.0
    %1183 = vmatpush1.msra.mxu0 %v1141
    %1184 = vmatprep.subr.mxu0 0.0
    %1185 = vmatpush1.msra.mxu0 %v1142
    %1186 = vmatprep.subr.mxu0 0.0
    %1187 = vmatpush1.msra.mxu0 0.0
    %1188 = vmatprep.subr.mxu0 0.0
    %1189 = vmatpush1.msra.mxu0 0.0
    %1190 = vmatprep.subr.mxu0 0.0
    %1191 = vmatpush1.msra.mxu0 0.0
    %1192 = vmatprep.subr.mxu0 0.0
    %1193 = vmatpush1.msra.mxu0 0.0
    %1194 = vmatprep.subr.mxu0 0.0
    %1195 = vmatpush1.msra.mxu0 0.0
    %1196 = vmatprep.subr.mxu0 0.0
    %1197 = vmatpush1.msra.mxu0 0.0
    %1198 = vmatprep.subr.mxu0 0.0
    %1199 = vmatpush1.msra.mxu0 0.0
    %1200 = vmatprep.subr.mxu0 0.0
    %1201 = vmatpush1.msra.mxu0 0.0
    %1202 = vmatprep.subr.mxu0 0.0
    %1203 = vmatpush1.msra.mxu0 0.0
    %1204 = vmatprep.subr.mxu0 0.0
    %1205 = vmatpush1.msra.mxu0 0.0
    %1206 = vmatprep.subr.mxu0 0.0
    %1207 = vmatpush1.msra.mxu0 0.0
    %1208 = vmatprep.subr.mxu0 0.0
    %1209 = vmatpush1.msra.mxu0 0.0
    %1210 = vmatprep.subr.mxu0 0.0
    %1211 = vmatpush1.msra.mxu0 0.0
    %1212 = vmatprep.subr.mxu0 0.0
    %1213 = vmatpush1.msra.mxu0 0.0
    %1214 = vmatprep.subr.mxu0 0.0
    %1215 = vmatpush1.msra.mxu0 0.0
    %1216 = vmatprep.subr.mxu0 0.0
    %1217 = vmatpush1.msra.mxu0 0.0
    %1218 = vmatprep.subr.mxu0 0.0
    %1219 = vmatpush1.msra.mxu0 0.0
    %1220 = vmatprep.subr.mxu0 0.0
    %1221 = vmatpush1.msra.mxu0 0.0
    %1222 = vmatprep.subr.mxu0 0.0
    %1223 = vmatpush1.msra.mxu0 0.0
    %1224 = vmatprep.subr.mxu0 0.0
    %1225 = vmatpush1.msra.mxu0 0.0
    %1226 = vmatprep.subr.mxu0 0.0
    %1227 = vmatpush1.msra.mxu0 0.0
    %1228 = vmatprep.subr.mxu0 0.0
    %1229 = vmatpush1.msra.mxu0 0.0
    %1230 = vmatprep.subr.mxu0 0.0
    %1231 = vmatpush1.msra.mxu0 0.0
    %1232 = vmatprep.subr.mxu0 0.0
    %1233 = vmatpush1.msra.mxu0 0.0
    %1234 = vmatprep.subr.mxu0 0.0
    %1235 = vmatpush1.msra.mxu0 0.0
    %1236 = vmatprep.subr.mxu0 0.0
    %1237 = vmatpush1.msra.mxu0 0.0
    %1238 = vmatprep.subr.mxu0 0.0
    %1239 = vmatpush1.msra.mxu0 0.0
    %1240 = vmatprep.subr.mxu0 0.0
    %1241 = vmatpush1.msra.mxu0 0.0
    %1242 = vmatprep.mubr.f32.mxu0 0.0
    %1243 = vmatmul.mubr.f32.gmra.mrb[0].mxu0 %v1155
    %v1244 = vpop.f32.mrb[0].mxu0
    %v1245 = vadd.f32 %v1152, %v1244
    %v1246 = vpop.f32.mrb[0].mxu0
    %1247 = vmatprep.mubr.f32.mxu0 0.0
    %1248 = vmatmul.mubr.f32.gmra.mrb[0].mxu0 %v1158
    %v1249 = vpop.f32.mrb[0].mxu0
    %v1250 = vadd.f32 %v1152, %v1249
    %v1251 = vpop.f32.mrb[0].mxu0
    %1252 = vmatprep.mubr.f32.mxu0 0.0
    %1253 = vmatmul.mubr.f32.gmra.mrb[0].mxu0 %v1161
    %v1254 = vpop.f32.mrb[0].mxu0
    %v1255 = vadd.f32 %v1152, %v1254
    %v1256 = vpop.f32.mrb[0].mxu0
    %1257 = vmatprep.mubr.f32.mxu0 0.0
    %1258 = vmatmul.mubr.f32.gmra.mrb[0].mxu0 %v1164
    %v1259 = vpop.f32.mrb[0].mxu0
    %v1260 = vadd.f32 %v1152, %v1259
    %v1261 = vpop.f32.mrb[0].mxu0
    %1262 = vmatprep.mubr.f32.mxu0 0.0
    %1263 = vmatmul.mubr.f32.gmra.mrb[0].mxu0 %v1167
    %v1264 = vpop.f32.mrb[0].mxu0
    %v1265 = vadd.f32 %v1152, %v1264
    %v1266 = vpop.f32.mrb[0].mxu0
    %1267 = vmatprep.mubr.f32.mxu0 0.0
    %1268 = vmatmul.mubr.f32.gmra.mrb[0].mxu0 %v1170
    %v1269 = vpop.f32.mrb[0].mxu0
    %v1270 = vadd.f32 %v1152, %v1269
    %v1271 = vpop.f32.mrb[0].mxu0
    %1272 = vmatprep.mubr.f32.mxu0 0.0
    %1273 = vmatmul.mubr.f32.gmra.mrb[0].mxu0 %v1173
    %v1274 = vpop.f32.mrb[0].mxu0
    %v1275 = vadd.f32 %v1152, %v1274
    %v1276 = vpop.f32.mrb[0].mxu0
    %1277 = vmatprep.mubr.f32.mxu0 0.0
    %1278 = vmatmul.mubr.f32.gmra.mrb[0].mxu0 %v1176
    %v1279 = vpop.f32.mrb[0].mxu0
    %v1280 = vadd.f32 %v1152, %v1279
    %v1281 = vpop.f32.mrb[0].mxu0
    %1282 = vdwg.mxu0
    %1283 = vst [vmem:[#allocation3] sm:$0xff] %v1245
    %1284 = vst [vmem:[#allocation3 + $0x8] sm:$0xff] %v1250
    %1285 = vst [vmem:[#allocation3 + $0x10] sm:$0xff] %v1255
    %1286 = vst [vmem:[#allocation3 + $0x18] sm:$0xff] %v1260
    %1287 = vst [vmem:[#allocation3 + $0x20] sm:$0xff] %v1265
    %1288 = vst [vmem:[#allocation3 + $0x28] sm:$0xff] %v1270
    %1289 = vst [vmem:[#allocation3 + $0x30] sm:$0xff] %v1275
    %1290 = vst [vmem:[#allocation3 + $0x38] sm:$0xff] %v1280
    %v1291 = vld [vmem:[#allocation3] sm:$0xff]
    %1292 = vmatprep.subr.mxu0 0.0
    %1293 = vmatpush1.msra.mxu0 %v1143
    %1294 = vmatprep.subr.mxu0 0.0
    %1295 = vmatpush1.msra.mxu0 %v1144
    %1296 = vmatprep.subr.mxu0 0.0
    %1297 = vmatpush1.msra.mxu0 %v1145
    %1298 = vmatprep.subr.mxu0 0.0
    %1299 = vmatpush1.msra.mxu0 %v1146
    %1300 = vmatprep.subr.mxu0 0.0
    %1301 = vmatpush1.msra.mxu0 0.0
    %1302 = vmatprep.subr.mxu0 0.0
    %1303 = vmatpush1.msra.mxu0 0.0
    %1304 = vmatprep.subr.mxu0 0.0
    %1305 = vmatpush1.msra.mxu0 0.0
    %1306 = vmatprep.subr.mxu0 0.0
    %1307 = vmatpush1.msra.mxu0 0.0
    %1308 = vmatprep.subr.mxu0 0.0
    %1309 = vmatpush1.msra.mxu0 0.0
    %1310 = vmatprep.subr.mxu0 0.0
    %1311 = vmatpush1.msra.mxu0 0.0
    %1312 = vmatprep.subr.mxu0 0.0
    %1313 = vmatpush1.msra.mxu0 0.0
    %1314 = vmatprep.subr.mxu0 0.0
    %1315 = vmatpush1.msra.mxu0 0.0
    %1316 = vmatprep.subr.mxu0 0.0
    %1317 = vmatpush1.msra.mxu0 0.0
    %1318 = vmatprep.subr.mxu0 0.0
    %1319 = vmatpush1.msra.mxu0 0.0
    %1320 = vmatprep.subr.mxu0 0.0
    %1321 = vmatpush1.msra.mxu0 0.0
    %1322 = vmatprep.subr.mxu0 0.0
    %1323 = vmatpush1.msra.mxu0 0.0
    %1324 = vmatprep.subr.mxu0 0.0
    %1325 = vmatpush1.msra.mxu0 0.0
    %1326 = vmatprep.subr.mxu0 0.0
    %1327 = vmatpush1.msra.mxu0 0.0
    %1328 = vmatprep.subr.mxu0 0.0
    %1329 = vmatpush1.msra.mxu0 0.0
    %1330 = vmatprep.subr.mxu0 0.0
    %1331 = vmatpush1.msra.mxu0 0.0
    %1332 = vmatprep.subr.mxu0 0.0
    %1333 = vmatpush1.msra.mxu0 0.0
    %1334 = vmatprep.subr.mxu0 0.0
    %1335 = vmatpush1.msra.mxu0 0.0
    %1336 = vmatprep.subr.mxu0 0.0
    %1337 = vmatpush1.msra.mxu0 0.0
    %1338 = vmatprep.subr.mxu0 0.0
    %1339 = vmatpush1.msra.mxu0 0.0
    %1340 = vmatprep.subr.mxu0 0.0
    %1341 = vmatpush1.msra.mxu0 0.0
    %1342 = vmatprep.subr.mxu0 0.0
    %1343 = vmatpush1.msra.mxu0 0.0
    %1344 = vmatprep.subr.mxu0 0.0
    %1345 = vmatpush1.msra.mxu0 0.0
    %1346 = vmatprep.subr.mxu0 0.0
    %1347 = vmatpush1.msra.mxu0 0.0
    %1348 = vmatprep.subr.mxu0 0.0
    %1349 = vmatpush1.msra.mxu0 0.0
    %1350 = vmatprep.subr.mxu0 0.0
    %1351 = vmatpush1.msra.mxu0 0.0
    %1352 = vmatprep.subr.mxu0 0.0
    %1353 = vmatpush1.msra.mxu0 0.0
    %1354 = vmatprep.subr.mxu0 0.0
    %1355 = vmatpush1.msra.mxu0 0.0
    %1356 = vmatprep.mubr.f32.mxu0 0.0
    %1357 = vmatmul.mubr.f32.gmra.mrb[0].mxu0 %v294
    %v1358 = vpop.f32.mrb[0].mxu0
    %v1359 = vadd.f32 0.0, %v1358
    %v1360 = vpop.f32.mrb[0].mxu0
    %1361 = vdwg.mxu0
    %v1362 = vadd.f32 %v1291, %v1359
    %v1363 = vxor.u32 %v1362, 2147483648
    %v1364 = vmul.f32 %v1363, 1.442695
    %v1365 = vpow.pop %v1364
    %v1366 = vadd.f32 %v1365, 1.0
    %v1367 = vrcp.pop %v1366
    %v1368 = vmul.f32 1.0, %v1367
    %v1369 = vtanh.pop %v1362
    %v1370 = vmul.f32 %v1368, 0.0
    %1372 = vrot.lane.b32.xlu0 %v1369, 64
    %v1373 = vpop.permute.xlu0 %1372
    %v1375 = vmul.f32 %v1368, %v1373
    %1377 = vrot.lane.b32.xlu0 %v1375, 32
    %v1378 = vpop.permute.xlu0 %1377
    %v1380 = vadd.f32 %v1370, %v1378
    %v1381 = vtanh.pop %v1380
    %1383 = vrot.lane.b32.xlu0 %v1381, 64
    %v1384 = vpop.permute.xlu0 %1383
    %v1386 = vmul.f32 %v1368, %v1384
    %1388 = vrot.lane.b32.xlu0 %v1386, 32
    %v1389 = vpop.permute.xlu0 %1388
    %1391 = vst.msk [vmem:[#allocation2] sm:$0xff] %vm292, %v1389
    %v1392 = vld [vmem:[%s396] sm:$0xff]
    %v1393 = vsel %vm292, %v1389, 0
    %1395 = vmatprep.subr.mxu0 0.0
    %1396 = vmatpush1.msra.mxu0 %v1143
    %1397 = vmatprep.subr.mxu0 0.0
    %1398 = vmatpush1.msra.mxu0 %v1144
    %1399 = vmatprep.subr.mxu0 0.0
    %1400 = vmatpush1.msra.mxu0 %v1145
    %1401 = vmatprep.subr.mxu0 0.0
    %1402 = vmatpush1.msra.mxu0 %v1146
    %1403 = vmatprep.subr.mxu0 0.0
    %1404 = vmatpush1.msra.mxu0 0.0
    %1405 = vmatprep.subr.mxu0 0.0
    %1406 = vmatpush1.msra.mxu0 0.0
    %1407 = vmatprep.subr.mxu0 0.0
    %1408 = vmatpush1.msra.mxu0 0.0
    %1409 = vmatprep.subr.mxu0 0.0
    %1410 = vmatpush1.msra.mxu0 0.0
    %1411 = vmatprep.subr.mxu0 0.0
    %1412 = vmatpush1.msra.mxu0 0.0
    %1413 = vmatprep.subr.mxu0 0.0
    %1414 = vmatpush1.msra.mxu0 0.0
    %1415 = vmatprep.subr.mxu0 0.0
    %1416 = vmatpush1.msra.mxu0 0.0
    %1417 = vmatprep.subr.mxu0 0.0
    %1418 = vmatpush1.msra.mxu0 0.0
    %1419 = vmatprep.subr.mxu0 0.0
    %1420 = vmatpush1.msra.mxu0 0.0
    %1421 = vmatprep.subr.mxu0 0.0
    %1422 = vmatpush1.msra.mxu0 0.0
    %1423 = vmatprep.subr.mxu0 0.0
    %1424 = vmatpush1.msra.mxu0 0.0
    %1425 = vmatprep.subr.mxu0 0.0
    %1426 = vmatpush1.msra.mxu0 0.0
    %1427 = vmatprep.subr.mxu0 0.0
    %1428 = vmatpush1.msra.mxu0 0.0
    %1429 = vmatprep.subr.mxu0 0.0
    %1430 = vmatpush1.msra.mxu0 0.0
    %1431 = vmatprep.subr.mxu0 0.0
    %1432 = vmatpush1.msra.mxu0 0.0
    %1433 = vmatprep.subr.mxu0 0.0
    %1434 = vmatpush1.msra.mxu0 0.0
    %1435 = vmatprep.subr.mxu0 0.0
    %1436 = vmatpush1.msra.mxu0 0.0
    %1437 = vmatprep.subr.mxu0 0.0
    %1438 = vmatpush1.msra.mxu0 0.0
    %1439 = vmatprep.subr.mxu0 0.0
    %1440 = vmatpush1.msra.mxu0 0.0
    %1441 = vmatprep.subr.mxu0 0.0
    %1442 = vmatpush1.msra.mxu0 0.0
    %1443 = vmatprep.subr.mxu0 0.0
    %1444 = vmatpush1.msra.mxu0 0.0
    %1445 = vmatprep.subr.mxu0 0.0
    %1446 = vmatpush1.msra.mxu0 0.0
    %1447 = vmatprep.subr.mxu0 0.0
    %1448 = vmatpush1.msra.mxu0 0.0
    %1449 = vmatprep.subr.mxu0 0.0
    %1450 = vmatpush1.msra.mxu0 0.0
    %1451 = vmatprep.subr.mxu0 0.0
    %1452 = vmatpush1.msra.mxu0 0.0
    %1453 = vmatprep.subr.mxu0 0.0
    %1454 = vmatpush1.msra.mxu0 0.0
    %1455 = vmatprep.subr.mxu0 0.0
    %1456 = vmatpush1.msra.mxu0 0.0
    %1457 = vmatprep.subr.mxu0 0.0
    %1458 = vmatpush1.msra.mxu0 0.0
    %1459 = vmatprep.mubr.f32.mxu0 0.0
    %1460 = vmatmul.mubr.f32.gmra.mrb[0].mxu0 %v1393
    %v1461 = vpop.f32.mrb[0].mxu0
    %v1462 = vadd.f32 0.0, %v1461
    %v1463 = vpop.f32.mrb[0].mxu0
    %1464 = vdwg.mxu0
    %v1465 = vadd.f32 %v1392, %v1462
    %v1466 = vxor.u32 %v1465, 2147483648
    %v1467 = vmul.f32 %v1466, 1.442695
    %v1468 = vpow.pop %v1467
    %v1469 = vadd.f32 %v1468, 1.0
    %v1470 = vrcp.pop %v1469
    %v1471 = vmul.f32 1.0, %v1470
    %v1472 = vtanh.pop %v1465
    %v1473 = vmul.f32 %v1471, %v1380
    %1475 = vrot.lane.b32.xlu0 %v1472, 64
    %v1476 = vpop.permute.xlu0 %1475
    %v1478 = vmul.f32 %v1471, %v1476
    %1480 = vrot.lane.b32.xlu0 %v1478, 32
    %v1481 = vpop.permute.xlu0 %1480
    %v1483 = vadd.f32 %v1473, %v1481
    %v1484 = vtanh.pop %v1483
    %1486 = vrot.lane.b32.xlu0 %v1484, 64
    %v1487 = vpop.permute.xlu0 %1486
    %v1489 = vmul.f32 %v1471, %v1487
    %1491 = vrot.lane.b32.xlu0 %v1489, 32
    %v1492 = vpop.permute.xlu0 %1491
    %1494 = vst.msk [vmem:[%s499] sm:$0xff] %vm292, %v1492
    %v1495 = vld [vmem:[%s501] sm:$0xff]
    %v1496 = vsel %vm292, %v1492, 0
    %1498 = vmatprep.subr.mxu0 0.0
    %1499 = vmatpush1.msra.mxu0 %v1143
    %1500 = vmatprep.subr.mxu0 0.0
    %1501 = vmatpush1.msra.mxu0 %v1144
    %1502 = vmatprep.subr.mxu0 0.0
    %1503 = vmatpush1.msra.mxu0 %v1145
    %1504 = vmatprep.subr.mxu0 0.0
    %1505 = vmatpush1.msra.mxu0 %v1146
    %1506 = vmatprep.subr.mxu0 0.0
    %1507 = vmatpush1.msra.mxu0 0.0
    %1508 = vmatprep.subr.mxu0 0.0
    %1509 = vmatpush1.msra.mxu0 0.0
    %1510 = vmatprep.subr.mxu0 0.0
    %1511 = vmatpush1.msra.mxu0 0.0
    %1512 = vmatprep.subr.mxu0 0.0
    %1513 = vmatpush1.msra.mxu0 0.0
    %1514 = vmatprep.subr.mxu0 0.0
    %1515 = vmatpush1.msra.mxu0 0.0
    %1516 = vmatprep.subr.mxu0 0.0
    %1517 = vmatpush1.msra.mxu0 0.0
    %1518 = vmatprep.subr.mxu0 0.0
    %1519 = vmatpush1.msra.mxu0 0.0
    %1520 = vmatprep.subr.mxu0 0.0
    %1521 = vmatpush1.msra.mxu0 0.0
    %1522 = vmatprep.subr.mxu0 0.0
    %1523 = vmatpush1.msra.mxu0 0.0
    %1524 = vmatprep.subr.mxu0 0.0
    %1525 = vmatpush1.msra.mxu0 0.0
    %1526 = vmatprep.subr.mxu0 0.0
    %1527 = vmatpush1.msra.mxu0 0.0
    %1528 = vmatprep.subr.mxu0 0.0
    %1529 = vmatpush1.msra.mxu0 0.0
    %1530 = vmatprep.subr.mxu0 0.0
    %1531 = vmatpush1.msra.mxu0 0.0
    %1532 = vmatprep.subr.mxu0 0.0
    %1533 = vmatpush1.msra.mxu0 0.0
    %1534 = vmatprep.subr.mxu0 0.0
    %1535 = vmatpush1.msra.mxu0 0.0
    %1536 = vmatprep.subr.mxu0 0.0
    %1537 = vmatpush1.msra.mxu0 0.0
    %1538 = vmatprep.subr.mxu0 0.0
    %1539 = vmatpush1.msra.mxu0 0.0
    %1540 = vmatprep.subr.mxu0 0.0
    %1541 = vmatpush1.msra.mxu0 0.0
    %1542 = vmatprep.subr.mxu0 0.0
    %1543 = vmatpush1.msra.mxu0 0.0
    %1544 = vmatprep.subr.mxu0 0.0
    %1545 = vmatpush1.msra.mxu0 0.0
    %1546 = vmatprep.subr.mxu0 0.0
    %1547 = vmatpush1.msra.mxu0 0.0
    %1548 = vmatprep.subr.mxu0 0.0
    %1549 = vmatpush1.msra.mxu0 0.0
    %1550 = vmatprep.subr.mxu0 0.0
    %1551 = vmatpush1.msra.mxu0 0.0
    %1552 = vmatprep.subr.mxu0 0.0
    %1553 = vmatpush1.msra.mxu0 0.0
    %1554 = vmatprep.subr.mxu0 0.0
    %1555 = vmatpush1.msra.mxu0 0.0
    %1556 = vmatprep.subr.mxu0 0.0
    %1557 = vmatpush1.msra.mxu0 0.0
    %1558 = vmatprep.subr.mxu0 0.0
    %1559 = vmatpush1.msra.mxu0 0.0
    %1560 = vmatprep.subr.mxu0 0.0
    %1561 = vmatpush1.msra.mxu0 0.0
    %1562 = vmatprep.mubr.f32.mxu0 0.0
    %1563 = vmatmul.mubr.f32.gmra.mrb[0].mxu0 %v1496
    %v1564 = vpop.f32.mrb[0].mxu0
    %v1565 = vadd.f32 0.0, %v1564
    %v1566 = vpop.f32.mrb[0].mxu0
    %1567 = vdwg.mxu0
    %v1568 = vadd.f32 %v1495, %v1565
    %v1569 = vxor.u32 %v1568, 2147483648
    %v1570 = vmul.f32 %v1569, 1.442695
    %v1571 = vpow.pop %v1570
    %v1572 = vadd.f32 %v1571, 1.0
    %v1573 = vrcp.pop %v1572
    %v1574 = vmul.f32 1.0, %v1573
    %v1575 = vtanh.pop %v1568
    %v1576 = vmul.f32 %v1574, %v1483
    %1578 = vrot.lane.b32.xlu0 %v1575, 64
    %v1579 = vpop.permute.xlu0 %1578
    %v1581 = vmul.f32 %v1574, %v1579
    %1583 = vrot.lane.b32.xlu0 %v1581, 32
    %v1584 = vpop.permute.xlu0 %1583
    %v1586 = vadd.f32 %v1576, %v1584
    %v1587 = vtanh.pop %v1586
    %1589 = vrot.lane.b32.xlu0 %v1587, 64
    %v1590 = vpop.permute.xlu0 %1589
    %v1592 = vmul.f32 %v1574, %v1590
    %1594 = vrot.lane.b32.xlu0 %v1592, 32
    %v1595 = vpop.permute.xlu0 %1594
    %1597 = vst.msk [vmem:[%s604] sm:$0xff] %vm292, %v1595
    %v1598 = vld [vmem:[%s606] sm:$0xff]
    %v1599 = vsel %vm292, %v1595, 0
    %1601 = vmatprep.subr.mxu0 0.0
    %1602 = vmatpush1.msra.mxu0 %v1143
    %1603 = vmatprep.subr.mxu0 0.0
    %1604 = vmatpush1.msra.mxu0 %v1144
    %1605 = vmatprep.subr.mxu0 0.0
    %1606 = vmatpush1.msra.mxu0 %v1145
    %1607 = vmatprep.subr.mxu0 0.0
    %1608 = vmatpush1.msra.mxu0 %v1146
    %1609 = vmatprep.subr.mxu0 0.0
    %1610 = vmatpush1.msra.mxu0 0.0
    %1611 = vmatprep.subr.mxu0 0.0
    %1612 = vmatpush1.msra.mxu0 0.0
    %1613 = vmatprep.subr.mxu0 0.0
    %1614 = vmatpush1.msra.mxu0 0.0
    %1615 = vmatprep.subr.mxu0 0.0
    %1616 = vmatpush1.msra.mxu0 0.0
    %1617 = vmatprep.subr.mxu0 0.0
    %1618 = vmatpush1.msra.mxu0 0.0
    %1619 = vmatprep.subr.mxu0 0.0
    %1620 = vmatpush1.msra.mxu0 0.0
    %1621 = vmatprep.subr.mxu0 0.0
    %1622 = vmatpush1.msra.mxu0 0.0
    %1623 = vmatprep.subr.mxu0 0.0
    %1624 = vmatpush1.msra.mxu0 0.0
    %1625 = vmatprep.subr.mxu0 0.0
    %1626 = vmatpush1.msra.mxu0 0.0
    %1627 = vmatprep.subr.mxu0 0.0
    %1628 = vmatpush1.msra.mxu0 0.0
    %1629 = vmatprep.subr.mxu0 0.0
    %1630 = vmatpush1.msra.mxu0 0.0
    %1631 = vmatprep.subr.mxu0 0.0
    %1632 = vmatpush1.msra.mxu0 0.0
    %1633 = vmatprep.subr.mxu0 0.0
    %1634 = vmatpush1.msra.mxu0 0.0
    %1635 = vmatprep.subr.mxu0 0.0
    %1636 = vmatpush1.msra.mxu0 0.0
    %1637 = vmatprep.subr.mxu0 0.0
    %1638 = vmatpush1.msra.mxu0 0.0
    %1639 = vmatprep.subr.mxu0 0.0
    %1640 = vmatpush1.msra.mxu0 0.0
    %1641 = vmatprep.subr.mxu0 0.0
    %1642 = vmatpush1.msra.mxu0 0.0
    %1643 = vmatprep.subr.mxu0 0.0
    %1644 = vmatpush1.msra.mxu0 0.0
    %1645 = vmatprep.subr.mxu0 0.0
    %1646 = vmatpush1.msra.mxu0 0.0
    %1647 = vmatprep.subr.mxu0 0.0
    %1648 = vmatpush1.msra.mxu0 0.0
    %1649 = vmatprep.subr.mxu0 0.0
    %1650 = vmatpush1.msra.mxu0 0.0
    %1651 = vmatprep.subr.mxu0 0.0
    %1652 = vmatpush1.msra.mxu0 0.0
    %1653 = vmatprep.subr.mxu0 0.0
    %1654 = vmatpush1.msra.mxu0 0.0
    %1655 = vmatprep.subr.mxu0 0.0
    %1656 = vmatpush1.msra.mxu0 0.0
    %1657 = vmatprep.subr.mxu0 0.0
    %1658 = vmatpush1.msra.mxu0 0.0
    %1659 = vmatprep.subr.mxu0 0.0
    %1660 = vmatpush1.msra.mxu0 0.0
    %1661 = vmatprep.subr.mxu0 0.0
    %1662 = vmatpush1.msra.mxu0 0.0
    %1663 = vmatprep.subr.mxu0 0.0
    %1664 = vmatpush1.msra.mxu0 0.0
    %1665 = vmatprep.mubr.f32.mxu0 0.0
    %1666 = vmatmul.mubr.f32.gmra.mrb[0].mxu0 %v1599
    %v1667 = vpop.f32.mrb[0].mxu0
    %v1668 = vadd.f32 0.0, %v1667
    %v1669 = vpop.f32.mrb[0].mxu0
    %1670 = vdwg.mxu0
    %v1671 = vadd.f32 %v1598, %v1668
    %v1672 = vxor.u32 %v1671, 2147483648
    %v1673 = vmul.f32 %v1672, 1.442695
    %v1674 = vpow.pop %v1673
    %v1675 = vadd.f32 %v1674, 1.0
    %v1676 = vrcp.pop %v1675
    %v1677 = vmul.f32 1.0, %v1676
    %v1678 = vtanh.pop %v1671
    %v1679 = vmul.f32 %v1677, %v1586
    %1681 = vrot.lane.b32.xlu0 %v1678, 64
    %v1682 = vpop.permute.xlu0 %1681
    %v1684 = vmul.f32 %v1677, %v1682
    %1686 = vrot.lane.b32.xlu0 %v1684, 32
    %v1687 = vpop.permute.xlu0 %1686
    %v1689 = vadd.f32 %v1679, %v1687
    %v1690 = vtanh.pop %v1689
    %1692 = vrot.lane.b32.xlu0 %v1690, 64
    %v1693 = vpop.permute.xlu0 %1692
    %v1695 = vmul.f32 %v1677, %v1693
    %1697 = vrot.lane.b32.xlu0 %v1695, 32
    %v1698 = vpop.permute.xlu0 %1697
    %1700 = vst.msk [vmem:[%s709] sm:$0xff] %vm292, %v1698
    %v1701 = vld [vmem:[%s711] sm:$0xff]
    %v1702 = vsel %vm292, %v1698, 0
    %1704 = vmatprep.subr.mxu0 0.0
    %1705 = vmatpush1.msra.mxu0 %v1143
    %1706 = vmatprep.subr.mxu0 0.0
    %1707 = vmatpush1.msra.mxu0 %v1144
    %1708 = vmatprep.subr.mxu0 0.0
    %1709 = vmatpush1.msra.mxu0 %v1145
    %1710 = vmatprep.subr.mxu0 0.0
    %1711 = vmatpush1.msra.mxu0 %v1146
    %1712 = vmatprep.subr.mxu0 0.0
    %1713 = vmatpush1.msra.mxu0 0.0
    %1714 = vmatprep.subr.mxu0 0.0
    %1715 = vmatpush1.msra.mxu0 0.0
    %1716 = vmatprep.subr.mxu0 0.0
    %1717 = vmatpush1.msra.mxu0 0.0
    %1718 = vmatprep.subr.mxu0 0.0
    %1719 = vmatpush1.msra.mxu0 0.0
    %1720 = vmatprep.subr.mxu0 0.0
    %1721 = vmatpush1.msra.mxu0 0.0
    %1722 = vmatprep.subr.mxu0 0.0
    %1723 = vmatpush1.msra.mxu0 0.0
    %1724 = vmatprep.subr.mxu0 0.0
    %1725 = vmatpush1.msra.mxu0 0.0
    %1726 = vmatprep.subr.mxu0 0.0
    %1727 = vmatpush1.msra.mxu0 0.0
    %1728 = vmatprep.subr.mxu0 0.0
    %1729 = vmatpush1.msra.mxu0 0.0
    %1730 = vmatprep.subr.mxu0 0.0
    %1731 = vmatpush1.msra.mxu0 0.0
    %1732 = vmatprep.subr.mxu0 0.0
    %1733 = vmatpush1.msra.mxu0 0.0
    %1734 = vmatprep.subr.mxu0 0.0
    %1735 = vmatpush1.msra.mxu0 0.0
    %1736 = vmatprep.subr.mxu0 0.0
    %1737 = vmatpush1.msra.mxu0 0.0
    %1738 = vmatprep.subr.mxu0 0.0
    %1739 = vmatpush1.msra.mxu0 0.0
    %1740 = vmatprep.subr.mxu0 0.0
    %1741 = vmatpush1.msra.mxu0 0.0
    %1742 = vmatprep.subr.mxu0 0.0
    %1743 = vmatpush1.msra.mxu0 0.0
    %1744 = vmatprep.subr.mxu0 0.0
    %1745 = vmatpush1.msra.mxu0 0.0
    %1746 = vmatprep.subr.mxu0 0.0
    %1747 = vmatpush1.msra.mxu0 0.0
    %1748 = vmatprep.subr.mxu0 0.0
    %1749 = vmatpush1.msra.mxu0 0.0
    %1750 = vmatprep.subr.mxu0 0.0
    %1751 = vmatpush1.msra.mxu0 0.0
    %1752 = vmatprep.subr.mxu0 0.0
    %1753 = vmatpush1.msra.mxu0 0.0
    %1754 = vmatprep.subr.mxu0 0.0
    %1755 = vmatpush1.msra.mxu0 0.0
    %1756 = vmatprep.subr.mxu0 0.0
    %1757 = vmatpush1.msra.mxu0 0.0
    %1758 = vmatprep.subr.mxu0 0.0
    %1759 = vmatpush1.msra.mxu0 0.0
    %1760 = vmatprep.subr.mxu0 0.0
    %1761 = vmatpush1.msra.mxu0 0.0
    %1762 = vmatprep.subr.mxu0 0.0
    %1763 = vmatpush1.msra.mxu0 0.0
    %1764 = vmatprep.subr.mxu0 0.0
    %1765 = vmatpush1.msra.mxu0 0.0
    %1766 = vmatprep.subr.mxu0 0.0
    %1767 = vmatpush1.msra.mxu0 0.0
    %1768 = vmatprep.mubr.f32.mxu0 0.0
    %1769 = vmatmul.mubr.f32.gmra.mrb[0].mxu0 %v1702
    %v1770 = vpop.f32.mrb[0].mxu0
    %v1771 = vadd.f32 0.0, %v1770
    %v1772 = vpop.f32.mrb[0].mxu0
    %1773 = vdwg.mxu0
    %v1774 = vadd.f32 %v1701, %v1771
    %v1775 = vxor.u32 %v1774, 2147483648
    %v1776 = vmul.f32 %v1775, 1.442695
    %v1777 = vpow.pop %v1776
    %v1778 = vadd.f32 %v1777, 1.0
    %v1779 = vrcp.pop %v1778
    %v1780 = vmul.f32 1.0, %v1779
    %v1781 = vtanh.pop %v1774
    %v1782 = vmul.f32 %v1780, %v1689
    %1784 = vrot.lane.b32.xlu0 %v1781, 64
    %v1785 = vpop.permute.xlu0 %1784
    %v1787 = vmul.f32 %v1780, %v1785
    %1789 = vrot.lane.b32.xlu0 %v1787, 32
    %v1790 = vpop.permute.xlu0 %1789
    %v1792 = vadd.f32 %v1782, %v1790
    %v1793 = vtanh.pop %v1792
    %1795 = vrot.lane.b32.xlu0 %v1793, 64
    %v1796 = vpop.permute.xlu0 %1795
    %v1798 = vmul.f32 %v1780, %v1796
    %1800 = vrot.lane.b32.xlu0 %v1798, 32
    %v1801 = vpop.permute.xlu0 %1800
    %1803 = vst.msk [vmem:[%s814] sm:$0xff] %vm292, %v1801
    %v1804 = vld [vmem:[%s816] sm:$0xff]
    %v1805 = vsel %vm292, %v1801, 0
    %1807 = vmatprep.subr.mxu0 0.0
    %1808 = vmatpush1.msra.mxu0 %v1143
    %1809 = vmatprep.subr.mxu0 0.0
    %1810 = vmatpush1.msra.mxu0 %v1144
    %1811 = vmatprep.subr.mxu0 0.0
    %1812 = vmatpush1.msra.mxu0 %v1145
    %1813 = vmatprep.subr.mxu0 0.0
    %1814 = vmatpush1.msra.mxu0 %v1146
    %1815 = vmatprep.subr.mxu0 0.0
    %1816 = vmatpush1.msra.mxu0 0.0
    %1817 = vmatprep.subr.mxu0 0.0
    %1818 = vmatpush1.msra.mxu0 0.0
    %1819 = vmatprep.subr.mxu0 0.0
    %1820 = vmatpush1.msra.mxu0 0.0
    %1821 = vmatprep.subr.mxu0 0.0
    %1822 = vmatpush1.msra.mxu0 0.0
    %1823 = vmatprep.subr.mxu0 0.0
    %1824 = vmatpush1.msra.mxu0 0.0
    %1825 = vmatprep.subr.mxu0 0.0
    %1826 = vmatpush1.msra.mxu0 0.0
    %1827 = vmatprep.subr.mxu0 0.0
    %1828 = vmatpush1.msra.mxu0 0.0
    %1829 = vmatprep.subr.mxu0 0.0
    %1830 = vmatpush1.msra.mxu0 0.0
    %1831 = vmatprep.subr.mxu0 0.0
    %1832 = vmatpush1.msra.mxu0 0.0
    %1833 = vmatprep.subr.mxu0 0.0
    %1834 = vmatpush1.msra.mxu0 0.0
    %1835 = vmatprep.subr.mxu0 0.0
    %1836 = vmatpush1.msra.mxu0 0.0
    %1837 = vmatprep.subr.mxu0 0.0
    %1838 = vmatpush1.msra.mxu0 0.0
    %1839 = vmatprep.subr.mxu0 0.0
    %1840 = vmatpush1.msra.mxu0 0.0
    %1841 = vmatprep.subr.mxu0 0.0
    %1842 = vmatpush1.msra.mxu0 0.0
    %1843 = vmatprep.subr.mxu0 0.0
    %1844 = vmatpush1.msra.mxu0 0.0
    %1845 = vmatprep.subr.mxu0 0.0
    %1846 = vmatpush1.msra.mxu0 0.0
    %1847 = vmatprep.subr.mxu0 0.0
    %1848 = vmatpush1.msra.mxu0 0.0
    %1849 = vmatprep.subr.mxu0 0.0
    %1850 = vmatpush1.msra.mxu0 0.0
    %1851 = vmatprep.subr.mxu0 0.0
    %1852 = vmatpush1.msra.mxu0 0.0
    %1853 = vmatprep.subr.mxu0 0.0
    %1854 = vmatpush1.msra.mxu0 0.0
    %1855 = vmatprep.subr.mxu0 0.0
    %1856 = vmatpush1.msra.mxu0 0.0
    %1857 = vmatprep.subr.mxu0 0.0
    %1858 = vmatpush1.msra.mxu0 0.0
    %1859 = vmatprep.subr.mxu0 0.0
    %1860 = vmatpush1.msra.mxu0 0.0
    %1861 = vmatprep.subr.mxu0 0.0
    %1862 = vmatpush1.msra.mxu0 0.0
    %1863 = vmatprep.subr.mxu0 0.0
    %1864 = vmatpush1.msra.mxu0 0.0
    %1865 = vmatprep.subr.mxu0 0.0
    %1866 = vmatpush1.msra.mxu0 0.0
    %1867 = vmatprep.subr.mxu0 0.0
    %1868 = vmatpush1.msra.mxu0 0.0
    %1869 = vmatprep.subr.mxu0 0.0
    %1870 = vmatpush1.msra.mxu0 0.0
    %1871 = vmatprep.mubr.f32.mxu0 0.0
    %1872 = vmatmul.mubr.f32.gmra.mrb[0].mxu0 %v1805
    %v1873 = vpop.f32.mrb[0].mxu0
    %v1874 = vadd.f32 0.0, %v1873
    %v1875 = vpop.f32.mrb[0].mxu0
    %1876 = vdwg.mxu0
    %v1877 = vadd.f32 %v1804, %v1874
    %v1878 = vxor.u32 %v1877, 2147483648
    %v1879 = vmul.f32 %v1878, 1.442695
    %v1880 = vpow.pop %v1879
    %v1881 = vadd.f32 %v1880, 1.0
    %v1882 = vrcp.pop %v1881
    %v1883 = vmul.f32 1.0, %v1882
    %v1884 = vtanh.pop %v1877
    %v1885 = vmul.f32 %v1883, %v1792
    %1887 = vrot.lane.b32.xlu0 %v1884, 64
    %v1888 = vpop.permute.xlu0 %1887
    %v1890 = vmul.f32 %v1883, %v1888
    %1892 = vrot.lane.b32.xlu0 %v1890, 32
    %v1893 = vpop.permute.xlu0 %1892
    %v1895 = vadd.f32 %v1885, %v1893
    %v1896 = vtanh.pop %v1895
    %1898 = vrot.lane.b32.xlu0 %v1896, 64
    %v1899 = vpop.permute.xlu0 %1898
    %v1901 = vmul.f32 %v1883, %v1899
    %1903 = vrot.lane.b32.xlu0 %v1901, 32
    %v1904 = vpop.permute.xlu0 %1903
    %1906 = vst.msk [vmem:[%s919] sm:$0xff] %vm292, %v1904
    %v1907 = vld [vmem:[%s921] sm:$0xff]
    %v1908 = vsel %vm292, %v1904, 0
    %1910 = vmatprep.subr.mxu0 0.0
    %1911 = vmatpush1.msra.mxu0 %v1143
    %1912 = vmatprep.subr.mxu0 0.0
    %1913 = vmatpush1.msra.mxu0 %v1144
    %1914 = vmatprep.subr.mxu0 0.0
    %1915 = vmatpush1.msra.mxu0 %v1145
    %1916 = vmatprep.subr.mxu0 0.0
    %1917 = vmatpush1.msra.mxu0 %v1146
    %1918 = vmatprep.subr.mxu0 0.0
    %1919 = vmatpush1.msra.mxu0 0.0
    %1920 = vmatprep.subr.mxu0 0.0
    %1921 = vmatpush1.msra.mxu0 0.0
    %1922 = vmatprep.subr.mxu0 0.0
    %1923 = vmatpush1.msra.mxu0 0.0
    %1924 = vmatprep.subr.mxu0 0.0
    %1925 = vmatpush1.msra.mxu0 0.0
    %1926 = vmatprep.subr.mxu0 0.0
    %1927 = vmatpush1.msra.mxu0 0.0
    %1928 = vmatprep.subr.mxu0 0.0
    %1929 = vmatpush1.msra.mxu0 0.0
    %1930 = vmatprep.subr.mxu0 0.0
    %1931 = vmatpush1.msra.mxu0 0.0
    %1932 = vmatprep.subr.mxu0 0.0
    %1933 = vmatpush1.msra.mxu0 0.0
    %1934 = vmatprep.subr.mxu0 0.0
    %1935 = vmatpush1.msra.mxu0 0.0
    %1936 = vmatprep.subr.mxu0 0.0
    %1937 = vmatpush1.msra.mxu0 0.0
    %1938 = vmatprep.subr.mxu0 0.0
    %1939 = vmatpush1.msra.mxu0 0.0
    %1940 = vmatprep.subr.mxu0 0.0
    %1941 = vmatpush1.msra.mxu0 0.0
    %1942 = vmatprep.subr.mxu0 0.0
    %1943 = vmatpush1.msra.mxu0 0.0
    %1944 = vmatprep.subr.mxu0 0.0
    %1945 = vmatpush1.msra.mxu0 0.0
    %1946 = vmatprep.subr.mxu0 0.0
    %1947 = vmatpush1.msra.mxu0 0.0
    %1948 = vmatprep.subr.mxu0 0.0
    %1949 = vmatpush1.msra.mxu0 0.0
    %1950 = vmatprep.subr.mxu0 0.0
    %1951 = vmatpush1.msra.mxu0 0.0
    %1952 = vmatprep.subr.mxu0 0.0
    %1953 = vmatpush1.msra.mxu0 0.0
    %1954 = vmatprep.subr.mxu0 0.0
    %1955 = vmatpush1.msra.mxu0 0.0
    %1956 = vmatprep.subr.mxu0 0.0
    %1957 = vmatpush1.msra.mxu0 0.0
    %1958 = vmatprep.subr.mxu0 0.0
    %1959 = vmatpush1.msra.mxu0 0.0
    %1960 = vmatprep.subr.mxu0 0.0
    %1961 = vmatpush1.msra.mxu0 0.0
    %1962 = vmatprep.subr.mxu0 0.0
    %1963 = vmatpush1.msra.mxu0 0.0
    %1964 = vmatprep.subr.mxu0 0.0
    %1965 = vmatpush1.msra.mxu0 0.0
    %1966 = vmatprep.subr.mxu0 0.0
    %1967 = vmatpush1.msra.mxu0 0.0
    %1968 = vmatprep.subr.mxu0 0.0
    %1969 = vmatpush1.msra.mxu0 0.0
    %1970 = vmatprep.subr.mxu0 0.0
    %1971 = vmatpush1.msra.mxu0 0.0
    %1972 = vmatprep.subr.mxu0 0.0
    %1973 = vmatpush1.msra.mxu0 0.0
    %1974 = vmatprep.mubr.f32.mxu0 0.0
    %1975 = vmatmul.mubr.f32.gmra.mrb[0].mxu0 %v1908
    %v1976 = vpop.f32.mrb[0].mxu0
    %v1977 = vadd.f32 0.0, %v1976
    %v1978 = vpop.f32.mrb[0].mxu0
    %1979 = vdwg.mxu0
    %v1980 = vadd.f32 %v1907, %v1977
    %v1981 = vxor.u32 %v1980, 2147483648
    %v1982 = vmul.f32 %v1981, 1.442695
    %v1983 = vpow.pop %v1982
    %v1984 = vadd.f32 %v1983, 1.0
    %v1985 = vrcp.pop %v1984
    %v1986 = vmul.f32 1.0, %v1985
    %v1987 = vtanh.pop %v1980
    %v1988 = vmul.f32 %v1986, %v1895
    %1990 = vrot.lane.b32.xlu0 %v1987, 64
    %v1991 = vpop.permute.xlu0 %1990
    %v1993 = vmul.f32 %v1986, %v1991
    %1995 = vrot.lane.b32.xlu0 %v1993, 32
    %v1996 = vpop.permute.xlu0 %1995
    %v1998 = vadd.f32 %v1988, %v1996
    %v1999 = vtanh.pop %v1998
    %2001 = vrot.lane.b32.xlu0 %v1999, 64
    %v2002 = vpop.permute.xlu0 %2001
    %v2004 = vmul.f32 %v1986, %v2002
    %2006 = vrot.lane.b32.xlu0 %v2004, 32
    %v2007 = vpop.permute.xlu0 %2006
    %2009 = vst.msk [vmem:[%s1024] sm:$0xff] %vm292, %v2007
    %v2010 = vld [vmem:[%s1026] sm:$0xff]
    %v2011 = vsel %vm292, %v2007, 0
    %2013 = vmatprep.subr.mxu0 0.0
    %2014 = vmatpush1.msra.mxu0 %v1143
    %2015 = vmatprep.subr.mxu0 0.0
    %2016 = vmatpush1.msra.mxu0 %v1144
    %2017 = vmatprep.subr.mxu0 0.0
    %2018 = vmatpush1.msra.mxu0 %v1145
    %2019 = vmatprep.subr.mxu0 0.0
    %2020 = vmatpush1.msra.mxu0 %v1146
    %2021 = vmatprep.subr.mxu0 0.0
    %2022 = vmatpush1.msra.mxu0 0.0
    %2023 = vmatprep.subr.mxu0 0.0
    %2024 = vmatpush1.msra.mxu0 0.0
    %2025 = vmatprep.subr.mxu0 0.0
    %2026 = vmatpush1.msra.mxu0 0.0
    %2027 = vmatprep.subr.mxu0 0.0
    %2028 = vmatpush1.msra.mxu0 0.0
    %2029 = vmatprep.subr.mxu0 0.0
    %2030 = vmatpush1.msra.mxu0 0.0
    %2031 = vmatprep.subr.mxu0 0.0
    %2032 = vmatpush1.msra.mxu0 0.0
    %2033 = vmatprep.subr.mxu0 0.0
    %2034 = vmatpush1.msra.mxu0 0.0
    %2035 = vmatprep.subr.mxu0 0.0
    %2036 = vmatpush1.msra.mxu0 0.0
    %2037 = vmatprep.subr.mxu0 0.0
    %2038 = vmatpush1.msra.mxu0 0.0
    %2039 = vmatprep.subr.mxu0 0.0
    %2040 = vmatpush1.msra.mxu0 0.0
    %2041 = vmatprep.subr.mxu0 0.0
    %2042 = vmatpush1.msra.mxu0 0.0
    %2043 = vmatprep.subr.mxu0 0.0
    %2044 = vmatpush1.msra.mxu0 0.0
    %2045 = vmatprep.subr.mxu0 0.0
    %2046 = vmatpush1.msra.mxu0 0.0
    %2047 = vmatprep.subr.mxu0 0.0
    %2048 = vmatpush1.msra.mxu0 0.0
    %2049 = vmatprep.subr.mxu0 0.0
    %2050 = vmatpush1.msra.mxu0 0.0
    %2051 = vmatprep.subr.mxu0 0.0
    %2052 = vmatpush1.msra.mxu0 0.0
    %2053 = vmatprep.subr.mxu0 0.0
    %2054 = vmatpush1.msra.mxu0 0.0
    %2055 = vmatprep.subr.mxu0 0.0
    %2056 = vmatpush1.msra.mxu0 0.0
    %2057 = vmatprep.subr.mxu0 0.0
    %2058 = vmatpush1.msra.mxu0 0.0
    %2059 = vmatprep.subr.mxu0 0.0
    %2060 = vmatpush1.msra.mxu0 0.0
    %2061 = vmatprep.subr.mxu0 0.0
    %2062 = vmatpush1.msra.mxu0 0.0
    %2063 = vmatprep.subr.mxu0 0.0
    %2064 = vmatpush1.msra.mxu0 0.0
    %2065 = vmatprep.subr.mxu0 0.0
    %2066 = vmatpush1.msra.mxu0 0.0
    %2067 = vmatprep.subr.mxu0 0.0
    %2068 = vmatpush1.msra.mxu0 0.0
    %2069 = vmatprep.subr.mxu0 0.0
    %2070 = vmatpush1.msra.mxu0 0.0
    %2071 = vmatprep.subr.mxu0 0.0
    %2072 = vmatpush1.msra.mxu0 0.0
    %2073 = vmatprep.subr.mxu0 0.0
    %2074 = vmatpush1.msra.mxu0 0.0
    %2075 = vmatprep.subr.mxu0 0.0
    %2076 = vmatpush1.msra.mxu0 0.0
    %2077 = vmatprep.mubr.f32.mxu0 0.0
    %2078 = vmatmul.mubr.f32.gmra.mrb[0].mxu0 %v2011
    %v2079 = vpop.f32.mrb[0].mxu0
    %v2080 = vadd.f32 0.0, %v2079
    %v2081 = vpop.f32.mrb[0].mxu0
    %2082 = vdwg.mxu0
    %v2083 = vadd.f32 %v2010, %v2080
    %v2084 = vxor.u32 %v2083, 2147483648
    %v2085 = vmul.f32 %v2084, 1.442695
    %v2086 = vpow.pop %v2085
    %v2087 = vadd.f32 %v2086, 1.0
    %v2088 = vrcp.pop %v2087
    %v2089 = vmul.f32 1.0, %v2088
    %v2090 = vtanh.pop %v2083
    %v2091 = vmul.f32 %v2089, %v1998
    %2093 = vrot.lane.b32.xlu0 %v2090, 64
    %v2094 = vpop.permute.xlu0 %2093
    %v2096 = vmul.f32 %v2089, %v2094
    %2098 = vrot.lane.b32.xlu0 %v2096, 32
    %v2099 = vpop.permute.xlu0 %2098
    %v2101 = vadd.f32 %v2091, %v2099
    %v2102 = vtanh.pop %v2101
    %2104 = vrot.lane.b32.xlu0 %v2102, 64
    %v2105 = vpop.permute.xlu0 %2104
    %v2107 = vmul.f32 %v2089, %v2105
    %2109 = vrot.lane.b32.xlu0 %v2107, 32
    %v2110 = vpop.permute.xlu0 %2109
    %2112 = vst.msk [vmem:[%s1129] sm:$0xff] %vm292, %v2110
    %v2113 = vld [vmem:[#allocation13] sm:$0xff]
    %v2114 = vld [vmem:[#allocation13 + $0x8] sm:$0xff]
    %v2115 = vld [vmem:[#allocation13 + $0x10] sm:$0xff]
    %v2116 = vld [vmem:[#allocation13 + $0x18] sm:$0xff]
    %v2117 = vld [vmem:[#allocation15] sm:$0x1]
    %v2119 = vlaneseq
    %v2120 = vshrl.u32 %v2119, 7
    %v2121 = vsub.s32 0, %v2120
    %v2122 = vrot.slane %v2117, %v2121
    %v2124 = vsel %vm292, %v2110, 0
    %2126 = vmatprep.subr.mxu0 0.0
    %2127 = vmatpush1.msra.mxu0 %v2113
    %2128 = vmatprep.subr.mxu0 0.0
    %2129 = vmatpush1.msra.mxu0 %v2114
    %2130 = vmatprep.subr.mxu0 0.0
    %2131 = vmatpush1.msra.mxu0 %v2115
    %2132 = vmatprep.subr.mxu0 0.0
    %2133 = vmatpush1.msra.mxu0 %v2116
    %2134 = vmatprep.subr.mxu0 0.0
    %2135 = vmatpush1.msra.mxu0 0.0
    %2136 = vmatprep.subr.mxu0 0.0
    %2137 = vmatpush1.msra.mxu0 0.0
    %2138 = vmatprep.subr.mxu0 0.0
    %2139 = vmatpush1.msra.mxu0 0.0
    %2140 = vmatprep.subr.mxu0 0.0
    %2141 = vmatpush1.msra.mxu0 0.0
    %2142 = vmatprep.subr.mxu0 0.0
    %2143 = vmatpush1.msra.mxu0 0.0
    %2144 = vmatprep.subr.mxu0 0.0
    %2145 = vmatpush1.msra.mxu0 0.0
    %2146 = vmatprep.subr.mxu0 0.0
    %2147 = vmatpush1.msra.mxu0 0.0
    %2148 = vmatprep.subr.mxu0 0.0
    %2149 = vmatpush1.msra.mxu0 0.0
    %2150 = vmatprep.subr.mxu0 0.0
    %2151 = vmatpush1.msra.mxu0 0.0
    %2152 = vmatprep.subr.mxu0 0.0
    %2153 = vmatpush1.msra.mxu0 0.0
    %2154 = vmatprep.subr.mxu0 0.0
    %2155 = vmatpush1.msra.mxu0 0.0
    %2156 = vmatprep.subr.mxu0 0.0
    %2157 = vmatpush1.msra.mxu0 0.0
    %2158 = vmatprep.subr.mxu0 0.0
    %2159 = vmatpush1.msra.mxu0 0.0
    %2160 = vmatprep.subr.mxu0 0.0
    %2161 = vmatpush1.msra.mxu0 0.0
    %2162 = vmatprep.subr.mxu0 0.0
    %2163 = vmatpush1.msra.mxu0 0.0
    %2164 = vmatprep.subr.mxu0 0.0
    %2165 = vmatpush1.msra.mxu0 0.0
    %2166 = vmatprep.subr.mxu0 0.0
    %2167 = vmatpush1.msra.mxu0 0.0
    %2168 = vmatprep.subr.mxu0 0.0
    %2169 = vmatpush1.msra.mxu0 0.0
    %2170 = vmatprep.subr.mxu0 0.0
    %2171 = vmatpush1.msra.mxu0 0.0
    %2172 = vmatprep.subr.mxu0 0.0
    %2173 = vmatpush1.msra.mxu0 0.0
    %2174 = vmatprep.subr.mxu0 0.0
    %2175 = vmatpush1.msra.mxu0 0.0
    %2176 = vmatprep.subr.mxu0 0.0
    %2177 = vmatpush1.msra.mxu0 0.0
    %2178 = vmatprep.subr.mxu0 0.0
    %2179 = vmatpush1.msra.mxu0 0.0
    %2180 = vmatprep.subr.mxu0 0.0
    %2181 = vmatpush1.msra.mxu0 0.0
    %2182 = vmatprep.subr.mxu0 0.0
    %2183 = vmatpush1.msra.mxu0 0.0
    %2184 = vmatprep.subr.mxu0 0.0
    %2185 = vmatpush1.msra.mxu0 0.0
    %2186 = vmatprep.subr.mxu0 0.0
    %2187 = vmatpush1.msra.mxu0 0.0
    %2188 = vmatprep.subr.mxu0 0.0
    %2189 = vmatpush1.msra.mxu0 0.0
    %2190 = vmatprep.mubr.f32.mxu0 0.0
    %2191 = vmatmul.mubr.f32.gmra.mrb[0].mxu0 %v2124
    %v2192 = vpop.f32.mrb[0].mxu0
    %v2193 = vadd.f32 %v2122, %v2192
    %v2194 = vpop.f32.mrb[0].mxu0
    %2195 = vdwg.mxu0
    %vm2196 = vcmp.gt.f32.partialorder %v2193, 0.0
    %v2197 = vmul.f32 %v2193, 0.01
    %v2198 = vsel %vm2196, %v2193, %v2197
    %v2199 = vld [vmem:[%s9] sm:$0xff]
    %v2200 = vld [vmem:[%s9 + $0x8] sm:$0xff]
    %v2201 = vld [vmem:[%s9 + $0x10] sm:$0xff]
    %v2202 = vld [vmem:[%s9 + $0x18] sm:$0xff]
    %v2203 = vld [vmem:[%s10] sm:$0x1]
    %v2205 = vlaneseq
    %v2206 = vshrl.u32 %v2205, 7
    %v2207 = vsub.s32 0, %v2206
    %v2208 = vrot.slane %v2203, %v2207
    %v2211 = vsel %vm292, %v2198, 0
    %2213 = vmatprep.subr.mxu0 0.0
    %2214 = vmatpush1.msra.mxu0 %v2199
    %2215 = vmatprep.subr.mxu0 0.0
    %2216 = vmatpush1.msra.mxu0 %v2200
    %2217 = vmatprep.subr.mxu0 0.0
    %2218 = vmatpush1.msra.mxu0 %v2201
    %2219 = vmatprep.subr.mxu0 0.0
    %2220 = vmatpush1.msra.mxu0 %v2202
    %2221 = vmatprep.subr.mxu0 0.0
    %2222 = vmatpush1.msra.mxu0 0.0
    %2223 = vmatprep.subr.mxu0 0.0
    %2224 = vmatpush1.msra.mxu0 0.0
    %2225 = vmatprep.subr.mxu0 0.0
    %2226 = vmatpush1.msra.mxu0 0.0
    %2227 = vmatprep.subr.mxu0 0.0
    %2228 = vmatpush1.msra.mxu0 0.0
    %2229 = vmatprep.subr.mxu0 0.0
    %2230 = vmatpush1.msra.mxu0 0.0
    %2231 = vmatprep.subr.mxu0 0.0
    %2232 = vmatpush1.msra.mxu0 0.0
    %2233 = vmatprep.subr.mxu0 0.0
    %2234 = vmatpush1.msra.mxu0 0.0
    %2235 = vmatprep.subr.mxu0 0.0
    %2236 = vmatpush1.msra.mxu0 0.0
    %2237 = vmatprep.subr.mxu0 0.0
    %2238 = vmatpush1.msra.mxu0 0.0
    %2239 = vmatprep.subr.mxu0 0.0
    %2240 = vmatpush1.msra.mxu0 0.0
    %2241 = vmatprep.subr.mxu0 0.0
    %2242 = vmatpush1.msra.mxu0 0.0
    %2243 = vmatprep.subr.mxu0 0.0
    %2244 = vmatpush1.msra.mxu0 0.0
    %2245 = vmatprep.subr.mxu0 0.0
    %2246 = vmatpush1.msra.mxu0 0.0
    %2247 = vmatprep.subr.mxu0 0.0
    %2248 = vmatpush1.msra.mxu0 0.0
    %2249 = vmatprep.subr.mxu0 0.0
    %2250 = vmatpush1.msra.mxu0 0.0
    %2251 = vmatprep.subr.mxu0 0.0
    %2252 = vmatpush1.msra.mxu0 0.0
    %2253 = vmatprep.subr.mxu0 0.0
    %2254 = vmatpush1.msra.mxu0 0.0
    %2255 = vmatprep.subr.mxu0 0.0
    %2256 = vmatpush1.msra.mxu0 0.0
    %2257 = vmatprep.subr.mxu0 0.0
    %2258 = vmatpush1.msra.mxu0 0.0
    %2259 = vmatprep.subr.mxu0 0.0
    %2260 = vmatpush1.msra.mxu0 0.0
    %2261 = vmatprep.subr.mxu0 0.0
    %2262 = vmatpush1.msra.mxu0 0.0
    %2263 = vmatprep.subr.mxu0 0.0
    %2264 = vmatpush1.msra.mxu0 0.0
    %2265 = vmatprep.subr.mxu0 0.0
    %2266 = vmatpush1.msra.mxu0 0.0
    %2267 = vmatprep.subr.mxu0 0.0
    %2268 = vmatpush1.msra.mxu0 0.0
    %2269 = vmatprep.subr.mxu0 0.0
    %2270 = vmatpush1.msra.mxu0 0.0
    %2271 = vmatprep.subr.mxu0 0.0
    %2272 = vmatpush1.msra.mxu0 0.0
    %2273 = vmatprep.subr.mxu0 0.0
    %2274 = vmatpush1.msra.mxu0 0.0
    %2275 = vmatprep.subr.mxu0 0.0
    %2276 = vmatpush1.msra.mxu0 0.0
    %2277 = vmatprep.mubr.f32.mxu0 0.0
    %2278 = vmatmul.mubr.f32.gmra.mrb[0].mxu0 %v2211
    %v2279 = vpop.f32.mrb[0].mxu0
    %v2280 = vadd.f32 %v2208, %v2279
    %v2281 = vpop.f32.mrb[0].mxu0
    %2282 = vdwg.mxu0
    %2283 = vst [vmem:[#allocation16] sm:$0xff] %v2280
    // Predicated region
    $region74: #{tpu_custom_call.1} parent=1 // pred_check
      _
    $region75: #{tpu_custom_call.1} parent=1 // pred_check_branch
      %2285 = sbr.rel (0) target = $region77
    $region76: #{tpu_custom_call.1} parent=1 // pred_region
      %s2287 = ssub.s32 128, 128
      %2288 = vsyncadd [#allocation6], %s2287
      %s2290 = sshll.u32 [#allocation16], 4
      %s2291 = int_to_ptr.vmem [resolvable:$true] %s2290
      %2293 = dma.vmem_to_hbm [thread:$0]  %s2291, 128, %s11, [#allocation6]
    $region77: #{tpu_custom_call.1} parent=1 // pred_fallthru
      _
    // Predicated region
    $region78: #{tpu_custom_call.1} parent=1 // pred_check
      _
    $region79: #{tpu_custom_call.1} parent=1 // pred_check_branch
      %2295 = sbr.rel (0) target = $region81
    $region80: #{tpu_custom_call.1} parent=1 // pred_region
      %2296 = dma.done [#allocation6], 128
    $region81: #{tpu_custom_call.1} parent=1 // pred_fallthru
      _
    %2297 = vsyncpa [#allocation5], 1
    %2298 = vsyncpa [#allocation8], 1
    %2299 = vsyncpa [#allocation11], 1
    %2300 = vsyncpa [#allocation14], 1
    %2301 = vsyncpa [#allocation6], 1

</llo_original>
